<compile_context>
chip_gen: v7x
topology: tpu7x:2x2x1
jax: 0.10.0
libtpu: 0.0.40
codegen_flags: <defaults>
</compile_context>

<pallas_src>
import functools

import jax
import jax.numpy as jnp
from jax.experimental import pallas as pl
from jax.experimental.pallas import tpu as pltpu

LOG_STD_MAX = 2
LOG_STD_MIN = -10

_LANE = 128


def _round_up(x, m):
    return ((x + m - 1) // m) * m


# --------------------------------------------------------------------------- #
# Kernel
# --------------------------------------------------------------------------- #
def _tanh_normal_policy_kernel(n_hidden, p_act, lmin, lmax, *refs):
    # refs = (s,
    #         [w_h, b_h] * n_hidden,
    #         w_mean, b_mean, w_logstd, b_logstd,
    #         action_scale, action_bias,
    #         out)
    s_ref = refs[0]
    p = refs[1:-1]
    out_ref = refs[-1]

    # Stream f32 state; cast to bf16 (MXU-native) only after the load.
    h = s_ref[...].astype(jnp.bfloat16)
    for i in range(n_hidden):
        w = p[2 * i][...]                       # bf16 (d_in_pad, H) VMEM-resident
        b = p[2 * i + 1][...]                   # f32  (1, H) sublane broadcast
        h = jnp.dot(h, w, preferred_element_type=jnp.float32) + b
        h = jnp.maximum(h, 0.0).astype(jnp.bfloat16)

    base = 2 * n_hidden
    w_mean, b_mean = p[base][...], p[base + 1][...]
    w_ls, b_ls = p[base + 2][...], p[base + 3][...]
    scale, bias = p[base + 4][...], p[base + 5][...]

    # Split final layer: two lane-aligned dots instead of a chunk() slice.
    mean = jnp.dot(h, w_mean, preferred_element_type=jnp.float32) + b_mean
    log_std = jnp.dot(h, w_ls, preferred_element_type=jnp.float32) + b_ls

    # logStd = lmin + 0.5 * (tanh(logStd) + 1) * (lmax - lmin); std = exp(logStd)
    log_std = lmin + 0.5 * (jnp.tanh(log_std) + 1.0) * (lmax - lmin)
    std = jnp.exp(log_std)

    # getAction(deterministic=True): tanh(mean) * action_scale + action_bias
    act = jnp.tanh(mean) * scale + bias

    # Three 128-lane-aligned segment stores into the packed slab [mean|std|act]
    # -> unmasked vst, no concat temporary.
    od = out_ref.dtype
    out_ref[:, 0:p_act] = mean.astype(od)
    out_ref[:, p_act:2 * p_act] = std.astype(od)
    out_ref[:, 2 * p_act:3 * p_act] = act.astype(od)


# --------------------------------------------------------------------------- #
# One-time parameter preparation
# --------------------------------------------------------------------------- #
def prepare_params(weights, biases, action_scale, action_bias,
                   compute_dtype=jnp.bfloat16):
    """Cast to bf16, zero-pad hidden/output widths to 128 lanes, split last layer.

    `weights` are (d_in, d_out) (PyTorch nn.Linear weights pre-transposed).
    Returns (flat_param_list, d_action, p_act) with p_act = round_up(d_action, 128).
    Zero padding is numerically inert through Linear + ReLU.
    """
    d_action = weights[-1].shape[1] // 2
    p_act = _round_up(d_action, _LANE)

    flat = []
    for li, (w, b) in enumerate(zip(weights[:-1], biases[:-1])):
        w = jnp.asarray(w, jnp.float32)
        b = jnp.asarray(b, jnp.float32)
        d_in, d_h = w.shape
        in_pad = 0 if li == 0 else _round_up(d_in, _LANE) - d_in
        out_pad = _round_up(d_h, _LANE) - d_h
        flat.append(jnp.pad(w, ((0, in_pad), (0, out_pad))).astype(compute_dtype))
        flat.append(jnp.pad(b, ((0, out_pad),)).reshape(1, -1))

    w_last = jnp.asarray(weights[-1], jnp.float32)
    b_last = jnp.asarray(biases[-1], jnp.float32)
    d_in_last = w_last.shape[0]
    in_pad = 0 if len(weights) == 1 else _round_up(d_in_last, _LANE) - d_in_last
    a_pad = p_act - d_action

    flat.append(jnp.pad(w_last[:, :d_action],
                        ((0, in_pad), (0, a_pad))).astype(compute_dtype))   # W_mean
    flat.append(jnp.pad(b_last[:d_action], ((0, a_pad),)).reshape(1, -1))   # b_mean
    flat.append(jnp.pad(w_last[:, d_action:],
                        ((0, in_pad), (0, a_pad))).astype(compute_dtype))   # W_logstd
    flat.append(jnp.pad(b_last[d_action:], ((0, a_pad),)).reshape(1, -1))   # b_logstd
    flat.append(jnp.pad(jnp.asarray(action_scale, jnp.float32),
                        ((0, a_pad),)).reshape(1, -1))                      # scale
    flat.append(jnp.pad(jnp.asarray(action_bias, jnp.float32),
                        ((0, a_pad),)).reshape(1, -1))                      # bias
    return flat, d_action, p_act


# --------------------------------------------------------------------------- #
# Wrapper
# --------------------------------------------------------------------------- #
def tanh_normal_policy_forward(s, params_flat, d_action, p_act,
                               log_std_min=LOG_STD_MIN, log_std_max=LOG_STD_MAX,
                               block_b=2048, out_dtype=jnp.float32):
    """Returns (mean, std, deterministic_action) of the TanhNormal policy."""
    B, d_state = s.shape
    n_hidden = (len(params_flat) - 6) // 2
    d_out = 3 * p_act

    # ---- batch tile: large (amortizes per-step overhead / feeds MXU M dim),
    # but keep >= 4 grid steps when possible so v7x's 2 TCs can split the grid.
    granule = 8 if jnp.dtype(s.dtype).itemsize >= 4 else 16
    min_steps = 4
    tb_target = _round_up(max(1, -(-B // min_steps)), granule)
    TB = max(granule, min(block_b, tb_target, _round_up(B, granule)))

    # ---- generation-aware VMEM budget (v7x: 64 MiB/TC, v5e/v6e: 128 MiB).
    try:
        vmem_cap = int(pltpu.get_tpu_info().vmem_capacity_bytes)
    except Exception:  # conservative default (v7x per-TC capacity)
        vmem_cap = 64 << 20
    vmem_budget = int(vmem_cap * 0.70)

    param_bytes = sum(int(prm.size) * prm.dtype.itemsize for prm in params_flat)
    widest = max(int(prm.shape[-1]) for prm in params_flat)
    out_isz = jnp.dtype(out_dtype).itemsize
    s_isz = jnp.dtype(s.dtype).itemsize

    def footprint(tb, param_buf):
        tile = tb * d_state * s_isz + tb * d_out * out_isz     # one buffer each
        act_scratch = 2 * tb * widest * 4                      # hidden temporaries
        return param_buf * param_bytes + 2 * tile + act_scratch + (2 << 20)

    # Shrink TB until the (conservative, double-buffered-params) footprint fits.
    while TB > granule and footprint(TB, 2) > vmem_budget:
        TB = max(granule, _round_up(TB // 2, granule))
    # TODO(synk): if param_bytes alone exceeds the budget, add a layer/K
    # streaming grid axis instead of keeping every weight VMEM-resident.

    B_pad = _round_up(B, TB)
    s_in = s if B_pad == B else jnp.pad(s, ((0, B_pad - B), (0, 0)))

    # ---- cost hint for XLA scheduling around the call.
    flops = 0
    for i in range(n_hidden):
        kdim, ndim = params_flat[2 * i].shape
        flops += 2 * B_pad * int(kdim) * int(ndim)
    k_last = int(params_flat[2 * n_hidden].shape[0])
    flops += 2 * (2 * B_pad * k_last * p_act)          # mean + logstd dots
    cost = pl.CostEstimate(
        flops=flops,
        transcendentals=3 * B_pad * p_act,             # tanh, exp, tanh
        bytes_accessed=(int(s_in.size) * s_isz + param_bytes
                        + B_pad * d_out * out_isz))

    kernel = functools.partial(
        _tanh_normal_policy_kernel, n_hidden, p_act,
        float(log_std_min), float(log_std_max))

    def build(single_buffer_params):
        in_specs = [pl.BlockSpec((TB, d_state), lambda i: (i, 0))]     # streamed
        for prm in params_flat:                                        # resident
            if single_buffer_params:
                spec = pl.BlockSpec(prm.shape, lambda i: (0, 0),
                                    pipeline_mode=pl.Buffered(1))
            else:
                spec = pl.BlockSpec(prm.shape, lambda i: (0, 0))
            in_specs.append(spec)
        out_spec = pl.BlockSpec((TB, d_out), lambda i: (i, 0))

        param_buf = 1 if single_buffer_params else 2
        vmem_limit = int(min(max(footprint(TB, param_buf), 16 << 20), vmem_budget))

        return pl.pallas_call(
            kernel,
            out_shape=jax.ShapeDtypeStruct((B_pad, d_out), out_dtype),
            grid=(B_pad // TB,),
            in_specs=in_specs,
            out_specs=out_spec,
            compiler_params=pltpu.CompilerParams(
                dimension_semantics=("parallel",),     # v7x: shard batch grid on 2 TCs
                vmem_limit_bytes=vmem_limit),
            cost_estimate=cost,
        )

    try:
        out = build(single_buffer_params=True)(s_in, *params_flat)
    except Exception:
        # Fallback if this JAX version rejects single-buffered BlockSpecs.
        out = build(single_buffer_params=False)(s_in, *params_flat)

    mean = out[:B, 0:d_action]
    std = out[:B, p_act:p_act + d_action]
    act = out[:B, 2 * p_act:2 * p_act + d_action]
    return mean, std, act


# --------------------------------------------------------------------------- #
# Test harness
# --------------------------------------------------------------------------- #
def _make_params(key, d_state, d_action, d_hidden, n_hidden):
    """Deterministic synthetic MLP params (weights stored as (d_in, d_out))."""
    dims = [d_state] + [d_hidden] * n_hidden + [2 * d_action]
    weights, biases = [], []
    for i in range(len(dims) - 1):
        key, wk, bk = jax.random.split(key, 3)
        fan_in = dims[i]
        scale = 1.0 / jnp.sqrt(jnp.float32(fan_in))
        weights.append(jax.random.uniform(wk, (dims[i], dims[i + 1]),
                                          jnp.float32, -scale, scale))
        biases.append(jax.random.uniform(bk, (dims[i + 1],),
                                         jnp.float32, -scale, scale))
    return weights, biases


def _reference(s, weights, biases, scale, bias, lmin, lmax,
               compute_dtype=jnp.bfloat16):
    """Pure-JAX reference mirroring the kernel's bf16-in / f32-accumulate math."""
    h = s.astype(compute_dtype)
    n = len(weights)
    for i, (w, b) in enumerate(zip(weights, biases)):
        h = jnp.dot(h, w.astype(compute_dtype),
                    preferred_element_type=jnp.float32) + b.astype(jnp.float32)
        if i < n - 1:
            h = jnp.maximum(h, 0.0).astype(compute_dtype)
    d_action = weights[-1].shape[1] // 2
    mean, log_std = h[:, :d_action], h[:, d_action:]
    log_std = lmin + 0.5 * (jnp.tanh(log_std) + 1.0) * (lmax - lmin)
    std = jnp.exp(log_std)
    act = jnp.tanh(mean) * scale + bias
    return mean, std, act


if __name__ == "__main__":
    B, dState, dAction, dHidden, nHidden = 8, 32, 8, 32, 2

    key = jax.random.PRNGKey(0)
    key, sk = jax.random.split(key)
    s = jax.random.normal(sk, (B, dState), jnp.float32)

    weights, biases = _make_params(key, dState, dAction, dHidden, nHidden)

    # action_space: high = +1, low = -1 per action dim
    high = jnp.ones((dAction,), jnp.float32)
    low = -jnp.ones((dAction,), jnp.float32)
    action_scale = (high - low) / 2.0
    action_bias = (high + low) / 2.0

    # One-time parameter preparation (bf16 cast, 128-lane padding, final split).
    params_flat, d_action, p_act = prepare_params(
        weights, biases, action_scale, action_bias)

    mean, std, action = tanh_normal_policy_forward(s, params_flat, d_action, p_act)
    jax.block_until_ready((mean, std, action))

    ref_mean, ref_std, ref_act = _reference(
        s, weights, biases, action_scale, action_bias,
        float(LOG_STD_MIN), float(LOG_STD_MAX))

    assert jnp.allclose(mean, ref_mean, atol=1e-3, rtol=1e-3)
    assert jnp.allclose(std, ref_std, atol=1e-3, rtol=1e-3)
    assert jnp.allclose(action, ref_act, atol=1e-3, rtol=1e-3)

    print("KERNEL_OK")
</pallas_src>

<mosaic_0001>
module attributes {stable_mosaic.version = 11 : i64} {
  func.func @_tanh_normal_policy_kernel(%arg0: i32, %arg1: memref<8x32xf32, #tpu.memory_space<vmem>>, %arg2: memref<32x128xbf16, #tpu.memory_space<vmem>>, %arg3: memref<1x128xf32, #tpu.memory_space<vmem>>, %arg4: memref<128x128xbf16, #tpu.memory_space<vmem>>, %arg5: memref<1x128xf32, #tpu.memory_space<vmem>>, %arg6: memref<128x128xbf16, #tpu.memory_space<vmem>>, %arg7: memref<1x128xf32, #tpu.memory_space<vmem>>, %arg8: memref<128x128xbf16, #tpu.memory_space<vmem>>, %arg9: memref<1x128xf32, #tpu.memory_space<vmem>>, %arg10: memref<1x128xf32, #tpu.memory_space<vmem>>, %arg11: memref<1x128xf32, #tpu.memory_space<vmem>>, %arg12: memref<8x384xf32, #tpu.memory_space<vmem>>) attributes {dimension_semantics = [#tpu.dimension_semantics<parallel>], iteration_bounds = array<i64: 1>, scalar_prefetch = 0 : i64, scratch_operands = 0 : i64, tpu.core_type = #tpu.core_type<tc>, window_params = [{transform_indices = @transform_0, window_bounds = array<i64: 8, 32>}, {pipeline_mode = #tpu.pipeline_mode<synchronous>, transform_indices = @transform_1, window_bounds = array<i64: 32, 128>}, {pipeline_mode = #tpu.pipeline_mode<synchronous>, transform_indices = @transform_2, window_bounds = array<i64: 1, 128>}, {pipeline_mode = #tpu.pipeline_mode<synchronous>, transform_indices = @transform_3, window_bounds = array<i64: 128, 128>}, {pipeline_mode = #tpu.pipeline_mode<synchronous>, transform_indices = @transform_4, window_bounds = array<i64: 1, 128>}, {pipeline_mode = #tpu.pipeline_mode<synchronous>, transform_indices = @transform_5, window_bounds = array<i64: 128, 128>}, {pipeline_mode = #tpu.pipeline_mode<synchronous>, transform_indices = @transform_6, window_bounds = array<i64: 1, 128>}, {pipeline_mode = #tpu.pipeline_mode<synchronous>, transform_indices = @transform_7, window_bounds = array<i64: 128, 128>}, {pipeline_mode = #tpu.pipeline_mode<synchronous>, transform_indices = @transform_8, window_bounds = array<i64: 1, 128>}, {pipeline_mode = #tpu.pipeline_mode<synchronous>, transform_indices = @transform_9, window_bounds = array<i64: 1, 128>}, {pipeline_mode = #tpu.pipeline_mode<synchronous>, transform_indices = @transform_10, window_bounds = array<i64: 1, 128>}, {transform_indices = @transform_11, window_bounds = array<i64: 8, 384>}]} {
    %c0 = arith.constant 0 : index
    %c0_0 = arith.constant 0 : index
    %0 = vector.load %arg1[%c0, %c0_0] : memref<8x32xf32, #tpu.memory_space<vmem>>, vector<8x32xf32>
    %1 = arith.truncf %0 : vector<8x32xf32> to vector<8x32xbf16>
    %c0_1 = arith.constant 0 : index
    %c0_2 = arith.constant 0 : index
    %2 = vector.load %arg2[%c0_1, %c0_2] : memref<32x128xbf16, #tpu.memory_space<vmem>>, vector<32x128xbf16>
    %c0_3 = arith.constant 0 : index
    %c0_4 = arith.constant 0 : index
    %3 = vector.load %arg3[%c0_3, %c0_4] : memref<1x128xf32, #tpu.memory_space<vmem>>, vector<1x128xf32>
    %cst = arith.constant dense<0.000000e+00> : vector<8x128xf32>
    %4 = tpu.matmul %1, %2, %cst {dimension_numbers = #tpu.dot_dimension_numbers<[1], [0], [0], [1], [0, 0, 1, 1], [], []>} : vector<8x32xbf16>, vector<32x128xbf16>, vector<8x128xf32> -> vector<8x128xf32>
    %5 = vector.broadcast %3 : vector<1x128xf32> to vector<8x128xf32>
    %6 = arith.addf %4, %5 : vector<8x128xf32>
    %cst_5 = arith.constant 0.000000e+00 : f32
    %7 = vector.broadcast %cst_5 : f32 to vector<8x128xf32>
    %8 = arith.maximumf %6, %7 : vector<8x128xf32>
    %9 = arith.truncf %8 : vector<8x128xf32> to vector<8x128xbf16>
    %c0_6 = arith.constant 0 : index
    %c0_7 = arith.constant 0 : index
    %10 = vector.load %arg4[%c0_6, %c0_7] : memref<128x128xbf16, #tpu.memory_space<vmem>>, vector<128x128xbf16>
    %c0_8 = arith.constant 0 : index
    %c0_9 = arith.constant 0 : index
    %11 = vector.load %arg5[%c0_8, %c0_9] : memref<1x128xf32, #tpu.memory_space<vmem>>, vector<1x128xf32>
    %cst_10 = arith.constant dense<0.000000e+00> : vector<8x128xf32>
    %12 = tpu.matmul %9, %10, %cst_10 {dimension_numbers = #tpu.dot_dimension_numbers<[1], [0], [0], [1], [0, 0, 1, 1], [], []>} : vector<8x128xbf16>, vector<128x128xbf16>, vector<8x128xf32> -> vector<8x128xf32>
    %13 = vector.broadcast %11 : vector<1x128xf32> to vector<8x128xf32>
    %14 = arith.addf %12, %13 : vector<8x128xf32>
    %cst_11 = arith.constant 0.000000e+00 : f32
    %15 = vector.broadcast %cst_11 : f32 to vector<8x128xf32>
    %16 = arith.maximumf %14, %15 : vector<8x128xf32>
    %17 = arith.truncf %16 : vector<8x128xf32> to vector<8x128xbf16>
    %c0_12 = arith.constant 0 : index
    %c0_13 = arith.constant 0 : index
    %18 = vector.load %arg6[%c0_12, %c0_13] : memref<128x128xbf16, #tpu.memory_space<vmem>>, vector<128x128xbf16>
    %c0_14 = arith.constant 0 : index
    %c0_15 = arith.constant 0 : index
    %19 = vector.load %arg7[%c0_14, %c0_15] : memref<1x128xf32, #tpu.memory_space<vmem>>, vector<1x128xf32>
    %c0_16 = arith.constant 0 : index
    %c0_17 = arith.constant 0 : index
    %20 = vector.load %arg8[%c0_16, %c0_17] : memref<128x128xbf16, #tpu.memory_space<vmem>>, vector<128x128xbf16>
    %c0_18 = arith.constant 0 : index
    %c0_19 = arith.constant 0 : index
    %21 = vector.load %arg9[%c0_18, %c0_19] : memref<1x128xf32, #tpu.memory_space<vmem>>, vector<1x128xf32>
    %c0_20 = arith.constant 0 : index
    %c0_21 = arith.constant 0 : index
    %22 = vector.load %arg10[%c0_20, %c0_21] : memref<1x128xf32, #tpu.memory_space<vmem>>, vector<1x128xf32>
    %c0_22 = arith.constant 0 : index
    %c0_23 = arith.constant 0 : index
    %23 = vector.load %arg11[%c0_22, %c0_23] : memref<1x128xf32, #tpu.memory_space<vmem>>, vector<1x128xf32>
    %cst_24 = arith.constant dense<0.000000e+00> : vector<8x128xf32>
    %24 = tpu.matmul %17, %18, %cst_24 {dimension_numbers = #tpu.dot_dimension_numbers<[1], [0], [0], [1], [0, 0, 1, 1], [], []>} : vector<8x128xbf16>, vector<128x128xbf16>, vector<8x128xf32> -> vector<8x128xf32>
    %25 = vector.broadcast %19 : vector<1x128xf32> to vector<8x128xf32>
    %26 = arith.addf %24, %25 : vector<8x128xf32>
    %cst_25 = arith.constant dense<0.000000e+00> : vector<8x128xf32>
    %27 = tpu.matmul %17, %20, %cst_25 {dimension_numbers = #tpu.dot_dimension_numbers<[1], [0], [0], [1], [0, 0, 1, 1], [], []>} : vector<8x128xbf16>, vector<128x128xbf16>, vector<8x128xf32> -> vector<8x128xf32>
    %28 = vector.broadcast %21 : vector<1x128xf32> to vector<8x128xf32>
    %29 = arith.addf %27, %28 : vector<8x128xf32>
    %30 = math.tanh %29 : vector<8x128xf32>
    %cst_26 = arith.constant 1.000000e+00 : f32
    %31 = vector.broadcast %cst_26 : f32 to vector<8x128xf32>
    %32 = arith.addf %30, %31 : vector<8x128xf32>
    %cst_27 = arith.constant 5.000000e-01 : f32
    %33 = vector.broadcast %cst_27 : f32 to vector<8x128xf32>
    %34 = arith.mulf %33, %32 : vector<8x128xf32>
    %cst_28 = arith.constant 1.200000e+01 : f32
    %35 = vector.broadcast %cst_28 : f32 to vector<8x128xf32>
    %36 = arith.mulf %34, %35 : vector<8x128xf32>
    %cst_29 = arith.constant -1.000000e+01 : f32
    %37 = vector.broadcast %cst_29 : f32 to vector<8x128xf32>
    %38 = arith.addf %37, %36 : vector<8x128xf32>
    %39 = math.exp %38 : vector<8x128xf32>
    %40 = math.tanh %26 : vector<8x128xf32>
    %41 = vector.broadcast %22 : vector<1x128xf32> to vector<8x128xf32>
    %42 = arith.mulf %40, %41 : vector<8x128xf32>
    %43 = vector.broadcast %23 : vector<1x128xf32> to vector<8x128xf32>
    %44 = arith.addf %42, %43 : vector<8x128xf32>
    %c0_30 = arith.constant 0 : index
    %c0_31 = arith.constant 0 : index
    %45 = vector.load %arg12[%c0_30, %c0_31] : memref<8x384xf32, #tpu.memory_space<vmem>>, vector<8x128xf32>
    tpu.vector_store %arg12[%c0_30, %c0_31], %26 {strides = array<i32>} : memref<8x384xf32, #tpu.memory_space<vmem>>, vector<8x128xf32>,
    %c0_32 = arith.constant 0 : index
    %c128 = arith.constant 128 : index
    %46 = vector.load %arg12[%c0_32, %c128] : memref<8x384xf32, #tpu.memory_space<vmem>>, vector<8x128xf32>
    tpu.vector_store %arg12[%c0_32, %c128], %39 {strides = array<i32>} : memref<8x384xf32, #tpu.memory_space<vmem>>, vector<8x128xf32>,
    %c0_33 = arith.constant 0 : index
    %c256 = arith.constant 256 : index
    %47 = vector.load %arg12[%c0_33, %c256] : memref<8x384xf32, #tpu.memory_space<vmem>>, vector<8x128xf32>
    tpu.vector_store %arg12[%c0_33, %c256], %44 {strides = array<i32>} : memref<8x384xf32, #tpu.memory_space<vmem>>, vector<8x128xf32>,
    return
  }
  func.func @transform_0(%arg0: i32) -> (i32, i32) {
    %c0_i32 = arith.constant 0 : i32
    %c0_i32_0 = arith.constant 0 : i32
    return %arg0, %c0_i32 : i32, i32
  }
  func.func @transform_1(%arg0: i32) -> (i32, i32) {
    %c0_i32 = arith.constant 0 : i32
    %c0_i32_0 = arith.constant 0 : i32
    %c0_i32_1 = arith.constant 0 : i32
    return %c0_i32, %c0_i32_0 : i32, i32
  }
  func.func @transform_2(%arg0: i32) -> (i32, i32) {
    %c0_i32 = arith.constant 0 : i32
    %c0_i32_0 = arith.constant 0 : i32
    %c0_i32_1 = arith.constant 0 : i32
    return %c0_i32, %c0_i32_0 : i32, i32
  }
  func.func @transform_3(%arg0: i32) -> (i32, i32) {
    %c0_i32 = arith.constant 0 : i32
    %c0_i32_0 = arith.constant 0 : i32
    %c0_i32_1 = arith.constant 0 : i32
    return %c0_i32, %c0_i32_0 : i32, i32
  }
  func.func @transform_4(%arg0: i32) -> (i32, i32) {
    %c0_i32 = arith.constant 0 : i32
    %c0_i32_0 = arith.constant 0 : i32
    %c0_i32_1 = arith.constant 0 : i32
    return %c0_i32, %c0_i32_0 : i32, i32
  }
  func.func @transform_5(%arg0: i32) -> (i32, i32) {
    %c0_i32 = arith.constant 0 : i32
    %c0_i32_0 = arith.constant 0 : i32
    %c0_i32_1 = arith.constant 0 : i32
    return %c0_i32, %c0_i32_0 : i32, i32
  }
  func.func @transform_6(%arg0: i32) -> (i32, i32) {
    %c0_i32 = arith.constant 0 : i32
    %c0_i32_0 = arith.constant 0 : i32
    %c0_i32_1 = arith.constant 0 : i32
    return %c0_i32, %c0_i32_0 : i32, i32
  }
  func.func @transform_7(%arg0: i32) -> (i32, i32) {
    %c0_i32 = arith.constant 0 : i32
    %c0_i32_0 = arith.constant 0 : i32
    %c0_i32_1 = arith.constant 0 : i32
    return %c0_i32, %c0_i32_0 : i32, i32
  }
  func.func @transform_8(%arg0: i32) -> (i32, i32) {
    %c0_i32 = arith.constant 0 : i32
    %c0_i32_0 = arith.constant 0 : i32
    %c0_i32_1 = arith.constant 0 : i32
    return %c0_i32, %c0_i32_0 : i32, i32
  }
  func.func @transform_9(%arg0: i32) -> (i32, i32) {
    %c0_i32 = arith.constant 0 : i32
    %c0_i32_0 = arith.constant 0 : i32
    %c0_i32_1 = arith.constant 0 : i32
    return %c0_i32, %c0_i32_0 : i32, i32
  }
  func.func @transform_10(%arg0: i32) -> (i32, i32) {
    %c0_i32 = arith.constant 0 : i32
    %c0_i32_0 = arith.constant 0 : i32
    %c0_i32_1 = arith.constant 0 : i32
    return %c0_i32, %c0_i32_0 : i32, i32
  }
  func.func @transform_11(%arg0: i32) -> (i32, i32) {
    %c0_i32 = arith.constant 0 : i32
    %c0_i32_0 = arith.constant 0 : i32
    return %arg0, %c0_i32 : i32, i32
  }
}

module attributes {stable_mosaic.version = 11 : i64} {
  func.func @_tanh_normal_policy_kernel(%arg0: i32, %arg1: memref<8x32xf32, #tpu.memory_space<vmem>>, %arg2: memref<32x128xbf16, #tpu.memory_space<vmem>>, %arg3: memref<1x128xf32, #tpu.memory_space<vmem>>, %arg4: memref<128x128xbf16, #tpu.memory_space<vmem>>, %arg5: memref<1x128xf32, #tpu.memory_space<vmem>>, %arg6: memref<128x128xbf16, #tpu.memory_space<vmem>>, %arg7: memref<1x128xf32, #tpu.memory_space<vmem>>, %arg8: memref<128x128xbf16, #tpu.memory_space<vmem>>, %arg9: memref<1x128xf32, #tpu.memory_space<vmem>>, %arg10: memref<1x128xf32, #tpu.memory_space<vmem>>, %arg11: memref<1x128xf32, #tpu.memory_space<vmem>>, %arg12: memref<8x384xf32, #tpu.memory_space<vmem>>) attributes {dimension_semantics = [#tpu.dimension_semantics<parallel>], iteration_bounds = array<i64: 1>, scalar_prefetch = 0 : i64, scratch_operands = 0 : i64, tpu.core_type = #tpu.core_type<tc>, window_params = [{transform_indices = @transform_0, window_bounds = array<i64: 8, 32>}, {pipeline_mode = #tpu.pipeline_mode<synchronous>, transform_indices = @transform_1, window_bounds = array<i64: 32, 128>}, {pipeline_mode = #tpu.pipeline_mode<synchronous>, transform_indices = @transform_2, window_bounds = array<i64: 1, 128>}, {pipeline_mode = #tpu.pipeline_mode<synchronous>, transform_indices = @transform_3, window_bounds = array<i64: 128, 128>}, {pipeline_mode = #tpu.pipeline_mode<synchronous>, transform_indices = @transform_4, window_bounds = array<i64: 1, 128>}, {pipeline_mode = #tpu.pipeline_mode<synchronous>, transform_indices = @transform_5, window_bounds = array<i64: 128, 128>}, {pipeline_mode = #tpu.pipeline_mode<synchronous>, transform_indices = @transform_6, window_bounds = array<i64: 1, 128>}, {pipeline_mode = #tpu.pipeline_mode<synchronous>, transform_indices = @transform_7, window_bounds = array<i64: 128, 128>}, {pipeline_mode = #tpu.pipeline_mode<synchronous>, transform_indices = @transform_8, window_bounds = array<i64: 1, 128>}, {pipeline_mode = #tpu.pipeline_mode<synchronous>, transform_indices = @transform_9, window_bounds = array<i64: 1, 128>}, {pipeline_mode = #tpu.pipeline_mode<synchronous>, transform_indices = @transform_10, window_bounds = array<i64: 1, 128>}, {transform_indices = @transform_11, window_bounds = array<i64: 8, 384>}]} {
    %c0 = arith.constant 0 : index
    %c0_0 = arith.constant 0 : index
    %0 = vector.load %arg1[%c0, %c0_0] : memref<8x32xf32, #tpu.memory_space<vmem>>, vector<8x32xf32>
    %1 = arith.truncf %0 : vector<8x32xf32> to vector<8x32xbf16>
    %c0_1 = arith.constant 0 : index
    %c0_2 = arith.constant 0 : index
    %2 = vector.load %arg2[%c0_1, %c0_2] : memref<32x128xbf16, #tpu.memory_space<vmem>>, vector<32x128xbf16>
    %c0_3 = arith.constant 0 : index
    %c0_4 = arith.constant 0 : index
    %3 = vector.load %arg3[%c0_3, %c0_4] : memref<1x128xf32, #tpu.memory_space<vmem>>, vector<1x128xf32>
    %cst = arith.constant dense<0.000000e+00> : vector<8x128xf32>
    %4 = tpu.matmul %1, %2, %cst {dimension_numbers = #tpu.dot_dimension_numbers<[1], [0], [0], [1], [0, 0, 1, 1], [], []>} : vector<8x32xbf16>, vector<32x128xbf16>, vector<8x128xf32> -> vector<8x128xf32>
    %5 = vector.broadcast %3 : vector<1x128xf32> to vector<8x128xf32>
    %6 = arith.addf %4, %5 : vector<8x128xf32>
    %cst_5 = arith.constant 0.000000e+00 : f32
    %7 = vector.broadcast %cst_5 : f32 to vector<8x128xf32>
    %8 = arith.maximumf %6, %7 : vector<8x128xf32>
    %9 = arith.truncf %8 : vector<8x128xf32> to vector<8x128xbf16>
    %c0_6 = arith.constant 0 : index
    %c0_7 = arith.constant 0 : index
    %10 = vector.load %arg4[%c0_6, %c0_7] : memref<128x128xbf16, #tpu.memory_space<vmem>>, vector<128x128xbf16>
    %c0_8 = arith.constant 0 : index
    %c0_9 = arith.constant 0 : index
    %11 = vector.load %arg5[%c0_8, %c0_9] : memref<1x128xf32, #tpu.memory_space<vmem>>, vector<1x128xf32>
    %cst_10 = arith.constant dense<0.000000e+00> : vector<8x128xf32>
    %12 = tpu.matmul %9, %10, %cst_10 {dimension_numbers = #tpu.dot_dimension_numbers<[1], [0], [0], [1], [0, 0, 1, 1], [], []>} : vector<8x128xbf16>, vector<128x128xbf16>, vector<8x128xf32> -> vector<8x128xf32>
    %13 = vector.broadcast %11 : vector<1x128xf32> to vector<8x128xf32>
    %14 = arith.addf %12, %13 : vector<8x128xf32>
    %cst_11 = arith.constant 0.000000e+00 : f32
    %15 = vector.broadcast %cst_11 : f32 to vector<8x128xf32>
    %16 = arith.maximumf %14, %15 : vector<8x128xf32>
    %17 = arith.truncf %16 : vector<8x128xf32> to vector<8x128xbf16>
    %c0_12 = arith.constant 0 : index
    %c0_13 = arith.constant 0 : index
    %18 = vector.load %arg6[%c0_12, %c0_13] : memref<128x128xbf16, #tpu.memory_space<vmem>>, vector<128x128xbf16>
    %c0_14 = arith.constant 0 : index
    %c0_15 = arith.constant 0 : index
    %19 = vector.load %arg7[%c0_14, %c0_15] : memref<1x128xf32, #tpu.memory_space<vmem>>, vector<1x128xf32>
    %c0_16 = arith.constant 0 : index
    %c0_17 = arith.constant 0 : index
    %20 = vector.load %arg8[%c0_16, %c0_17] : memref<128x128xbf16, #tpu.memory_space<vmem>>, vector<128x128xbf16>
    %c0_18 = arith.constant 0 : index
    %c0_19 = arith.constant 0 : index
    %21 = vector.load %arg9[%c0_18, %c0_19] : memref<1x128xf32, #tpu.memory_space<vmem>>, vector<1x128xf32>
    %c0_20 = arith.constant 0 : index
    %c0_21 = arith.constant 0 : index
    %22 = vector.load %arg10[%c0_20, %c0_21] : memref<1x128xf32, #tpu.memory_space<vmem>>, vector<1x128xf32>
    %c0_22 = arith.constant 0 : index
    %c0_23 = arith.constant 0 : index
    %23 = vector.load %arg11[%c0_22, %c0_23] : memref<1x128xf32, #tpu.memory_space<vmem>>, vector<1x128xf32>
    %cst_24 = arith.constant dense<0.000000e+00> : vector<8x128xf32>
    %24 = tpu.matmul %17, %18, %cst_24 {dimension_numbers = #tpu.dot_dimension_numbers<[1], [0], [0], [1], [0, 0, 1, 1], [], []>} : vector<8x128xbf16>, vector<128x128xbf16>, vector<8x128xf32> -> vector<8x128xf32>
    %25 = vector.broadcast %19 : vector<1x128xf32> to vector<8x128xf32>
    %26 = arith.addf %24, %25 : vector<8x128xf32>
    %cst_25 = arith.constant dense<0.000000e+00> : vector<8x128xf32>
    %27 = tpu.matmul %17, %20, %cst_25 {dimension_numbers = #tpu.dot_dimension_numbers<[1], [0], [0], [1], [0, 0, 1, 1], [], []>} : vector<8x128xbf16>, vector<128x128xbf16>, vector<8x128xf32> -> vector<8x128xf32>
    %28 = vector.broadcast %21 : vector<1x128xf32> to vector<8x128xf32>
    %29 = arith.addf %27, %28 : vector<8x128xf32>
    %30 = math.tanh %29 : vector<8x128xf32>
    %cst_26 = arith.constant 1.000000e+00 : f32
    %31 = vector.broadcast %cst_26 : f32 to vector<8x128xf32>
    %32 = arith.addf %30, %31 : vector<8x128xf32>
    %cst_27 = arith.constant 5.000000e-01 : f32
    %33 = vector.broadcast %cst_27 : f32 to vector<8x128xf32>
    %34 = arith.mulf %33, %32 : vector<8x128xf32>
    %cst_28 = arith.constant 1.200000e+01 : f32
    %35 = vector.broadcast %cst_28 : f32 to vector<8x128xf32>
    %36 = arith.mulf %34, %35 : vector<8x128xf32>
    %cst_29 = arith.constant -1.000000e+01 : f32
    %37 = vector.broadcast %cst_29 : f32 to vector<8x128xf32>
    %38 = arith.addf %37, %36 : vector<8x128xf32>
    %39 = math.exp %38 : vector<8x128xf32>
    %40 = math.tanh %26 : vector<8x128xf32>
    %41 = vector.broadcast %22 : vector<1x128xf32> to vector<8x128xf32>
    %42 = arith.mulf %40, %41 : vector<8x128xf32>
    %43 = vector.broadcast %23 : vector<1x128xf32> to vector<8x128xf32>
    %44 = arith.addf %42, %43 : vector<8x128xf32>
    %c0_30 = arith.constant 0 : index
    %c0_31 = arith.constant 0 : index
    %45 = vector.load %arg12[%c0_30, %c0_31] : memref<8x384xf32, #tpu.memory_space<vmem>>, vector<8x128xf32>
    tpu.vector_store %arg12[%c0_30, %c0_31], %26 {strides = array<i32>} : memref<8x384xf32, #tpu.memory_space<vmem>>, vector<8x128xf32>,
    %c0_32 = arith.constant 0 : index
    %c128 = arith.constant 128 : index
    %46 = vector.load %arg12[%c0_32, %c128] : memref<8x384xf32, #tpu.memory_space<vmem>>, vector<8x128xf32>
    tpu.vector_store %arg12[%c0_32, %c128], %39 {strides = array<i32>} : memref<8x384xf32, #tpu.memory_space<vmem>>, vector<8x128xf32>,
    %c0_33 = arith.constant 0 : index
    %c256 = arith.constant 256 : index
    %47 = vector.load %arg12[%c0_33, %c256] : memref<8x384xf32, #tpu.memory_space<vmem>>, vector<8x128xf32>
    tpu.vector_store %arg12[%c0_33, %c256], %44 {strides = array<i32>} : memref<8x384xf32, #tpu.memory_space<vmem>>, vector<8x128xf32>,
    return
  }
  func.func @transform_0(%arg0: i32) -> (i32, i32) {
    %c0_i32 = arith.constant 0 : i32
    %c0_i32_0 = arith.constant 0 : i32
    return %arg0, %c0_i32 : i32, i32
  }
  func.func @transform_1(%arg0: i32) -> (i32, i32) {
    %c0_i32 = arith.constant 0 : i32
    %c0_i32_0 = arith.constant 0 : i32
    %c0_i32_1 = arith.constant 0 : i32
    return %c0_i32, %c0_i32_0 : i32, i32
  }
  func.func @transform_2(%arg0: i32) -> (i32, i32) {
    %c0_i32 = arith.constant 0 : i32
    %c0_i32_0 = arith.constant 0 : i32
    %c0_i32_1 = arith.constant 0 : i32
    return %c0_i32, %c0_i32_0 : i32, i32
  }
  func.func @transform_3(%arg0: i32) -> (i32, i32) {
    %c0_i32 = arith.constant 0 : i32
    %c0_i32_0 = arith.constant 0 : i32
    %c0_i32_1 = arith.constant 0 : i32
    return %c0_i32, %c0_i32_0 : i32, i32
  }
  func.func @transform_4(%arg0: i32) -> (i32, i32) {
    %c0_i32 = arith.constant 0 : i32
    %c0_i32_0 = arith.constant 0 : i32
    %c0_i32_1 = arith.constant 0 : i32
    return %c0_i32, %c0_i32_0 : i32, i32
  }
  func.func @transform_5(%arg0: i32) -> (i32, i32) {
    %c0_i32 = arith.constant 0 : i32
    %c0_i32_0 = arith.constant 0 : i32
    %c0_i32_1 = arith.constant 0 : i32
    return %c0_i32, %c0_i32_0 : i32, i32
  }
  func.func @transform_6(%arg0: i32) -> (i32, i32) {
    %c0_i32 = arith.constant 0 : i32
    %c0_i32_0 = arith.constant 0 : i32
    %c0_i32_1 = arith.constant 0 : i32
    return %c0_i32, %c0_i32_0 : i32, i32
  }
  func.func @transform_7(%arg0: i32) -> (i32, i32) {
    %c0_i32 = arith.constant 0 : i32
    %c0_i32_0 = arith.constant 0 : i32
    %c0_i32_1 = arith.constant 0 : i32
    return %c0_i32, %c0_i32_0 : i32, i32
  }
  func.func @transform_8(%arg0: i32) -> (i32, i32) {
    %c0_i32 = arith.constant 0 : i32
    %c0_i32_0 = arith.constant 0 : i32
    %c0_i32_1 = arith.constant 0 : i32
    return %c0_i32, %c0_i32_0 : i32, i32
  }
  func.func @transform_9(%arg0: i32) -> (i32, i32) {
    %c0_i32 = arith.constant 0 : i32
    %c0_i32_0 = arith.constant 0 : i32
    %c0_i32_1 = arith.constant 0 : i32
    return %c0_i32, %c0_i32_0 : i32, i32
  }
  func.func @transform_10(%arg0: i32) -> (i32, i32) {
    %c0_i32 = arith.constant 0 : i32
    %c0_i32_0 = arith.constant 0 : i32
    %c0_i32_1 = arith.constant 0 : i32
    return %c0_i32, %c0_i32_0 : i32, i32
  }
  func.func @transform_11(%arg0: i32) -> (i32, i32) {
    %c0_i32 = arith.constant 0 : i32
    %c0_i32_0 = arith.constant 0 : i32
    return %arg0, %c0_i32 : i32, i32
  }
}

</mosaic_0001>

<llo_original>
// kernel: tpu_custom_call.1
$region0: #{tpu_custom_call.1}
  #allocation0 [shape = 'u32[]', space=smem, size = 0x4, offset = 0x4, fixed_abs, tag = 'smem constant byte address 0x4 - core index']
  #allocation1 [shape = 'u32[144,128]{1,0:T(1,128)}', space=vmem, size = 0x12000, scoped, tag = 'internal scratch']
  %s0 = inlined_call_operand.hbm [shape: f32[8,32], index: 0, kind: input, shape index: {}]
  %s1 = inlined_call_operand.hbm [shape: bf16[32,128], index: 1, kind: input, shape index: {}]
  %s2 = inlined_call_operand.vmem [shape: f32[1,128], index: 2, kind: input, shape index: {}]
  %s3 = inlined_call_operand.hbm [shape: bf16[128,128], index: 3, kind: input, shape index: {}]
  %s4 = inlined_call_operand.vmem [shape: f32[1,128], index: 4, kind: input, shape index: {}]
  %s5 = inlined_call_operand.hbm [shape: bf16[128,128], index: 5, kind: input, shape index: {}]
  %s6 = inlined_call_operand.vmem [shape: f32[1,128], index: 6, kind: input, shape index: {}]
  %s7 = inlined_call_operand.hbm [shape: bf16[128,128], index: 7, kind: input, shape index: {}]
  %s8 = inlined_call_operand.vmem [shape: f32[1,128], index: 8, kind: input, shape index: {}]
  %s9 = inlined_call_operand.vmem [shape: f32[1,128], index: 9, kind: input, shape index: {}]
  %s10 = inlined_call_operand.vmem [shape: f32[1,128], index: 10, kind: input, shape index: {}]
  %s11 = inlined_call_operand.hbm [shape: f32[8,384], index: 11, kind: output, shape index: {}]
  %s12 = sld [smem:[#allocation0]]
  $region74: #{tpu_custom_call.1} parent=0
    _
  %s14 = ssub.s32 1, %s12
  %s15 = scalar_select 0, %s14, %s12
  $region1: #{tpu_custom_call.1} parent=0
    #allocation2 [shape = 'u8[4096]{0}', space=vmem, size = 0x1000, scoped, tag = 'input window, operand 0, single buffered']
    #allocation3 [shape = 's32[1]{0}', space=sflag, size = 0x4, scoped, tag = 'scoped memory for tpu_custom_call.1']
    #allocation4 [shape = 's32[1]{0}', space=sflag, size = 0x4, scoped, tag = 'scoped memory for tpu_custom_call.1']
    #allocation5 [shape = 'u8[8192]{0}', space=vmem, size = 0x2000, scoped, tag = 'input window, operand 1, single buffered']
    #allocation6 [shape = 's32[1]{0}', space=sflag, size = 0x4, scoped, tag = 'scoped memory for tpu_custom_call.1']
    #allocation7 [shape = 'u8[32768]{0}', space=vmem, size = 0x8000, scoped, tag = 'input window, operand 3, single buffered']
    #allocation8 [shape = 'u8[32768]{0}', space=vmem, size = 0x8000, scoped, tag = 'input window, operand 5, single buffered']
    #allocation9 [shape = 's32[1]{0}', space=sflag, size = 0x4, scoped, tag = 'scoped memory for tpu_custom_call.1']
    #allocation10 [shape = 'u8[32768]{0}', space=vmem, size = 0x8000, scoped, tag = 'input window, operand 7, single buffered']
    #allocation11 [shape = 'u8[12288]{0}', space=vmem, size = 0x3000, scoped, tag = 'output window, operand 0, single buffered']
    %16 = vsyncpa [#allocation3], 0
    %17 = vsyncpa [#allocation6], 0
    %18 = vsyncpa [#allocation9], 0
    %19 = vsyncpa [#allocation4], 0
    // Predicated region
    $region2: #{tpu_custom_call.1} parent=1 // pred_check
      _
    $region3: #{tpu_custom_call.1} parent=1 // pred_check_branch
      %21 = sbr.rel (0) target = $region5
    $region4: #{tpu_custom_call.1} parent=1 // pred_region
      %s23 = ssub.s32 128, 128
      %24 = vsyncadd [#allocation3], %s23
      %s26 = sshll.u32 [#allocation2], 4
      %s27 = int_to_ptr.vmem [resolvable:$true] %s26
      %29 = dma.hbm_to_vmem [thread:$0]  %s0, 128, %s27, [#allocation3]
    $region5: #{tpu_custom_call.1} parent=1 // pred_fallthru
      _
    // Predicated region
    $region6: #{tpu_custom_call.1} parent=1 // pred_check
      _
    $region7: #{tpu_custom_call.1} parent=1 // pred_check_branch
      %31 = sbr.rel (0) target = $region9
    $region8: #{tpu_custom_call.1} parent=1 // pred_region
      %s33 = ssub.s32 256, 256
      %34 = vsyncadd [#allocation6], %s33
      %s35 = sshll.u32 [#allocation5], 4
      %s36 = int_to_ptr.vmem [resolvable:$true] %s35
      %41 = dma.hbm_to_vmem [thread:$0]  %s1, 256, %s36, [#allocation6], 64, 64, 4
    $region9: #{tpu_custom_call.1} parent=1 // pred_fallthru
      _
    // Predicated region
    $region10: #{tpu_custom_call.1} parent=1 // pred_check
      _
    $region11: #{tpu_custom_call.1} parent=1 // pred_check_branch
      %43 = sbr.rel (0) target = $region13
    $region12: #{tpu_custom_call.1} parent=1 // pred_region
      _
    $region13: #{tpu_custom_call.1} parent=1 // pred_fallthru
      _
    // Predicated region
    $region14: #{tpu_custom_call.1} parent=1 // pred_check
      _
    $region15: #{tpu_custom_call.1} parent=1 // pred_check_branch
      %45 = sbr.rel (0) target = $region17
    $region16: #{tpu_custom_call.1} parent=1 // pred_region
      %s47 = ssub.s32 1024, 1024
      %48 = vsyncadd [#allocation6], %s47
      %s49 = sshll.u32 [#allocation7], 4
      %s50 = int_to_ptr.vmem [resolvable:$true] %s49
      %55 = dma.hbm_to_vmem [thread:$0]  %s3, 1024, %s50, [#allocation6], 64, 64, 4
    $region17: #{tpu_custom_call.1} parent=1 // pred_fallthru
      _
    // Predicated region
    $region18: #{tpu_custom_call.1} parent=1 // pred_check
      _
    $region19: #{tpu_custom_call.1} parent=1 // pred_check_branch
      %57 = sbr.rel (0) target = $region21
    $region20: #{tpu_custom_call.1} parent=1 // pred_region
      _
    $region21: #{tpu_custom_call.1} parent=1 // pred_fallthru
      _
    // Predicated region
    $region22: #{tpu_custom_call.1} parent=1 // pred_check
      _
    $region23: #{tpu_custom_call.1} parent=1 // pred_check_branch
      %59 = sbr.rel (0) target = $region25
    $region24: #{tpu_custom_call.1} parent=1 // pred_region
      %s61 = ssub.s32 1024, 1024
      %62 = vsyncadd [#allocation9], %s61
      %s63 = sshll.u32 [#allocation8], 4
      %s64 = int_to_ptr.vmem [resolvable:$true] %s63
      %69 = dma.hbm_to_vmem [thread:$0]  %s5, 1024, %s64, [#allocation9], 64, 64, 4
    $region25: #{tpu_custom_call.1} parent=1 // pred_fallthru
      _
    // Predicated region
    $region26: #{tpu_custom_call.1} parent=1 // pred_check
      _
    $region27: #{tpu_custom_call.1} parent=1 // pred_check_branch
      %71 = sbr.rel (0) target = $region29
    $region28: #{tpu_custom_call.1} parent=1 // pred_region
      _
    $region29: #{tpu_custom_call.1} parent=1 // pred_fallthru
      _
    // Predicated region
    $region30: #{tpu_custom_call.1} parent=1 // pred_check
      _
    $region31: #{tpu_custom_call.1} parent=1 // pred_check_branch
      %73 = sbr.rel (0) target = $region33
    $region32: #{tpu_custom_call.1} parent=1 // pred_region
      %s75 = ssub.s32 1024, 1024
      %76 = vsyncadd [#allocation9], %s75
      %s77 = sshll.u32 [#allocation10], 4
      %s78 = int_to_ptr.vmem [resolvable:$true] %s77
      %83 = dma.hbm_to_vmem [thread:$0]  %s7, 1024, %s78, [#allocation9], 64, 64, 4
    $region33: #{tpu_custom_call.1} parent=1 // pred_fallthru
      _
    // Predicated region
    $region34: #{tpu_custom_call.1} parent=1 // pred_check
      _
    $region35: #{tpu_custom_call.1} parent=1 // pred_check_branch
      %85 = sbr.rel (0) target = $region37
    $region36: #{tpu_custom_call.1} parent=1 // pred_region
      _
    $region37: #{tpu_custom_call.1} parent=1 // pred_fallthru
      _
    // Predicated region
    $region38: #{tpu_custom_call.1} parent=1 // pred_check
      _
    $region39: #{tpu_custom_call.1} parent=1 // pred_check_branch
      %87 = sbr.rel (0) target = $region41
    $region40: #{tpu_custom_call.1} parent=1 // pred_region
      _
    $region41: #{tpu_custom_call.1} parent=1 // pred_fallthru
      _
    // Predicated region
    $region42: #{tpu_custom_call.1} parent=1 // pred_check
      _
    $region43: #{tpu_custom_call.1} parent=1 // pred_check_branch
      %89 = sbr.rel (0) target = $region45
    $region44: #{tpu_custom_call.1} parent=1 // pred_region
      _
    $region45: #{tpu_custom_call.1} parent=1 // pred_fallthru
      _
    // Predicated region
    $region46: #{tpu_custom_call.1} parent=1 // pred_check
      _
    $region47: #{tpu_custom_call.1} parent=1 // pred_check_branch
      %91 = sbr.rel (0) target = $region49
    $region48: #{tpu_custom_call.1} parent=1 // pred_region
      %92 = dma.done [#allocation3], 128
    $region49: #{tpu_custom_call.1} parent=1 // pred_fallthru
      _
    // Predicated region
    $region50: #{tpu_custom_call.1} parent=1 // pred_check
      _
    $region51: #{tpu_custom_call.1} parent=1 // pred_check_branch
      %94 = sbr.rel (0) target = $region53
    $region52: #{tpu_custom_call.1} parent=1 // pred_region
      %95 = dma.done [#allocation6], 256
    $region53: #{tpu_custom_call.1} parent=1 // pred_fallthru
      _
    // Predicated region
    $region54: #{tpu_custom_call.1} parent=1 // pred_check
      _
    $region55: #{tpu_custom_call.1} parent=1 // pred_check_branch
      %97 = sbr.rel (0) target = $region57
    $region56: #{tpu_custom_call.1} parent=1 // pred_region
      %98 = dma.done [#allocation6], 1024
    $region57: #{tpu_custom_call.1} parent=1 // pred_fallthru
      _
    // Predicated region
    $region58: #{tpu_custom_call.1} parent=1 // pred_check
      _
    $region59: #{tpu_custom_call.1} parent=1 // pred_check_branch
      %100 = sbr.rel (0) target = $region61
    $region60: #{tpu_custom_call.1} parent=1 // pred_region
      %101 = dma.done [#allocation9], 1024
    $region61: #{tpu_custom_call.1} parent=1 // pred_fallthru
      _
    // Predicated region
    $region62: #{tpu_custom_call.1} parent=1 // pred_check
      _
    $region63: #{tpu_custom_call.1} parent=1 // pred_check_branch
      %103 = sbr.rel (0) target = $region65
    $region64: #{tpu_custom_call.1} parent=1 // pred_region
      %104 = dma.done [#allocation9], 1024
    $region65: #{tpu_custom_call.1} parent=1 // pred_fallthru
      _
    %v106 = vld [vmem:[#allocation2] sm:$0xff]
    %v107 = vpack.c.bf16 %v106, %v106
    %v108 = vld [vmem:[#allocation5] sm:$0xf]
    %v109 = vld [vmem:[#allocation5 + $0x4] sm:$0xf]
    %v110 = vld [vmem:[#allocation5 + $0x8] sm:$0xf]
    %v111 = vld [vmem:[#allocation5 + $0xc] sm:$0xf]
    %v112 = vld [vmem:[%s2] sm:$0x1]
    %v114 = vlaneseq
    %v115 = vshrl.u32 %v114, 7
    %v116 = vsub.s32 0, %v115
    %v117 = vrot.slane %v112, %v116
    %v123 = vunpack.c.l.b16 %v108
    %v124 = vunpack.c.l.b16 %v109
    %v125 = vunpack.c.l.b16 %v110
    %v126 = vunpack.c.l.b16 %v111
    %v127 = vpack.c.b16 %v124, %v123
    %v128 = vpack.c.b16 %v126, %v125
    %vm131 = vcmask 261120
    %v133 = vsel %vm131, %v107, 0
    %135 = vmatprep.subr.bf16.mxu0 0
    %136 = vmatpush1.bf16.msra.mxu0 %v127
    %137 = vmatprep.subr.bf16.mxu0 0
    %138 = vmatpush1.bf16.msra.mxu0 %v128
    %139 = vmatprep.subr.bf16.mxu0 0
    %140 = vmatpush1.bf16.msra.mxu0 0
    %141 = vmatprep.subr.bf16.mxu0 0
    %142 = vmatpush1.bf16.msra.mxu0 0
    %143 = vmatprep.subr.bf16.mxu0 0
    %144 = vmatpush1.bf16.msra.mxu0 0
    %145 = vmatprep.subr.bf16.mxu0 0
    %146 = vmatpush1.bf16.msra.mxu0 0
    %147 = vmatprep.subr.bf16.mxu0 0
    %148 = vmatpush1.bf16.msra.mxu0 0
    %149 = vmatprep.subr.bf16.mxu0 0
    %150 = vmatpush1.bf16.msra.mxu0 0
    %151 = vmatprep.subr.bf16.mxu0 0
    %152 = vmatpush1.bf16.msra.mxu0 0
    %153 = vmatprep.subr.bf16.mxu0 0
    %154 = vmatpush1.bf16.msra.mxu0 0
    %155 = vmatprep.subr.bf16.mxu0 0
    %156 = vmatpush1.bf16.msra.mxu0 0
    %157 = vmatprep.subr.bf16.mxu0 0
    %158 = vmatpush1.bf16.msra.mxu0 0
    %159 = vmatprep.subr.bf16.mxu0 0
    %160 = vmatpush1.bf16.msra.mxu0 0
    %161 = vmatprep.subr.bf16.mxu0 0
    %162 = vmatpush1.bf16.msra.mxu0 0
    %163 = vmatprep.subr.bf16.mxu0 0
    %164 = vmatpush1.bf16.msra.mxu0 0
    %165 = vmatprep.subr.bf16.mxu0 0
    %166 = vmatpush1.bf16.msra.mxu0 0
    %167 = vmatprep.mubr.bf16.mxu0 0
    %168 = vmatmul.mubr.bf16.gmra.mrb[0].mxu0 %v133
    %v169 = vpop.f32.mrb[0].mxu0
    %v170 = vadd.f32 %v117, %v169
    %v171 = vpop.f32.mrb[0].mxu0
    %v172 = vpop.f32.mrb[0].mxu0
    %v173 = vpop.f32.mrb[0].mxu0
    %174 = vdwg.mxu0
    %v175 = vmax.f32 %v170, 0.0
    %v176 = vpack.c.bf16 %v175, %v175
    %v177 = vld [vmem:[#allocation7] sm:$0xf]
    %v178 = vld [vmem:[#allocation7 + $0x4] sm:$0xf]
    %v179 = vld [vmem:[#allocation7 + $0x8] sm:$0xf]
    %v180 = vld [vmem:[#allocation7 + $0xc] sm:$0xf]
    %v181 = vld [vmem:[#allocation7 + $0x10] sm:$0xf]
    %v182 = vld [vmem:[#allocation7 + $0x14] sm:$0xf]
    %v183 = vld [vmem:[#allocation7 + $0x18] sm:$0xf]
    %v184 = vld [vmem:[#allocation7 + $0x1c] sm:$0xf]
    %v185 = vld [vmem:[#allocation7 + $0x20] sm:$0xf]
    %v186 = vld [vmem:[#allocation7 + $0x24] sm:$0xf]
    %v187 = vld [vmem:[#allocation7 + $0x28] sm:$0xf]
    %v188 = vld [vmem:[#allocation7 + $0x2c] sm:$0xf]
    %v189 = vld [vmem:[#allocation7 + $0x30] sm:$0xf]
    %v190 = vld [vmem:[#allocation7 + $0x34] sm:$0xf]
    %v191 = vld [vmem:[#allocation7 + $0x38] sm:$0xf]
    %v192 = vld [vmem:[#allocation7 + $0x3c] sm:$0xf]
    %v193 = vld [vmem:[%s4] sm:$0x1]
    %v195 = vlaneseq
    %v196 = vshrl.u32 %v195, 7
    %v197 = vsub.s32 0, %v196
    %v198 = vrot.slane %v193, %v197
    %v216 = vunpack.c.l.b16 %v177
    %v217 = vunpack.c.l.b16 %v178
    %v218 = vunpack.c.l.b16 %v179
    %v219 = vunpack.c.l.b16 %v180
    %v220 = vunpack.c.l.b16 %v181
    %v221 = vunpack.c.l.b16 %v182
    %v222 = vunpack.c.l.b16 %v183
    %v223 = vunpack.c.l.b16 %v184
    %v224 = vunpack.c.l.b16 %v185
    %v225 = vunpack.c.l.b16 %v186
    %v226 = vunpack.c.l.b16 %v187
    %v227 = vunpack.c.l.b16 %v188
    %v228 = vunpack.c.l.b16 %v189
    %v229 = vunpack.c.l.b16 %v190
    %v230 = vunpack.c.l.b16 %v191
    %v231 = vunpack.c.l.b16 %v192
    %v232 = vpack.c.b16 %v217, %v216
    %v233 = vpack.c.b16 %v219, %v218
    %v234 = vpack.c.b16 %v221, %v220
    %v235 = vpack.c.b16 %v223, %v222
    %v236 = vpack.c.b16 %v225, %v224
    %v237 = vpack.c.b16 %v227, %v226
    %v238 = vpack.c.b16 %v229, %v228
    %v239 = vpack.c.b16 %v231, %v230
    %248 = vmatprep.subr.bf16.mxu0 0
    %249 = vmatpush1.bf16.msra.mxu0 %v232
    %250 = vmatprep.subr.bf16.mxu0 0
    %251 = vmatpush1.bf16.msra.mxu0 %v233
    %252 = vmatprep.subr.bf16.mxu0 0
    %253 = vmatpush1.bf16.msra.mxu0 %v234
    %254 = vmatprep.subr.bf16.mxu0 0
    %255 = vmatpush1.bf16.msra.mxu0 %v235
    %256 = vmatprep.subr.bf16.mxu0 0
    %257 = vmatpush1.bf16.msra.mxu0 %v236
    %258 = vmatprep.subr.bf16.mxu0 0
    %259 = vmatpush1.bf16.msra.mxu0 %v237
    %260 = vmatprep.subr.bf16.mxu0 0
    %261 = vmatpush1.bf16.msra.mxu0 %v238
    %262 = vmatprep.subr.bf16.mxu0 0
    %263 = vmatpush1.bf16.msra.mxu0 %v239
    %264 = vmatprep.subr.bf16.mxu0 0
    %265 = vmatpush1.bf16.msra.mxu0 0
    %266 = vmatprep.subr.bf16.mxu0 0
    %267 = vmatpush1.bf16.msra.mxu0 0
    %268 = vmatprep.subr.bf16.mxu0 0
    %269 = vmatpush1.bf16.msra.mxu0 0
    %270 = vmatprep.subr.bf16.mxu0 0
    %271 = vmatpush1.bf16.msra.mxu0 0
    %272 = vmatprep.subr.bf16.mxu0 0
    %273 = vmatpush1.bf16.msra.mxu0 0
    %274 = vmatprep.subr.bf16.mxu0 0
    %275 = vmatpush1.bf16.msra.mxu0 0
    %276 = vmatprep.subr.bf16.mxu0 0
    %277 = vmatpush1.bf16.msra.mxu0 0
    %278 = vmatprep.subr.bf16.mxu0 0
    %279 = vmatpush1.bf16.msra.mxu0 0
    %280 = vmatprep.mubr.bf16.mxu0 0
    %281 = vmatmul.mubr.bf16.gmra.mrb[0].mxu0 %v176
    %v282 = vpop.f32.mrb[0].mxu0
    %v283 = vadd.f32 %v198, %v282
    %v284 = vpop.f32.mrb[0].mxu0
    %v285 = vpop.f32.mrb[0].mxu0
    %v286 = vpop.f32.mrb[0].mxu0
    %287 = vdwg.mxu0
    %v288 = vmax.f32 %v283, 0.0
    %v289 = vpack.c.bf16 %v288, %v288
    %v290 = vld [vmem:[#allocation8] sm:$0xf]
    %v291 = vld [vmem:[#allocation8 + $0x4] sm:$0xf]
    %v292 = vld [vmem:[#allocation8 + $0x8] sm:$0xf]
    %v293 = vld [vmem:[#allocation8 + $0xc] sm:$0xf]
    %v294 = vld [vmem:[#allocation8 + $0x10] sm:$0xf]
    %v295 = vld [vmem:[#allocation8 + $0x14] sm:$0xf]
    %v296 = vld [vmem:[#allocation8 + $0x18] sm:$0xf]
    %v297 = vld [vmem:[#allocation8 + $0x1c] sm:$0xf]
    %v298 = vld [vmem:[#allocation8 + $0x20] sm:$0xf]
    %v299 = vld [vmem:[#allocation8 + $0x24] sm:$0xf]
    %v300 = vld [vmem:[#allocation8 + $0x28] sm:$0xf]
    %v301 = vld [vmem:[#allocation8 + $0x2c] sm:$0xf]
    %v302 = vld [vmem:[#allocation8 + $0x30] sm:$0xf]
    %v303 = vld [vmem:[#allocation8 + $0x34] sm:$0xf]
    %v304 = vld [vmem:[#allocation8 + $0x38] sm:$0xf]
    %v305 = vld [vmem:[#allocation8 + $0x3c] sm:$0xf]
    %v306 = vld [vmem:[%s6] sm:$0x1]
    %v307 = vld [vmem:[#allocation10] sm:$0xf]
    %v308 = vld [vmem:[#allocation10 + $0x4] sm:$0xf]
    %v309 = vld [vmem:[#allocation10 + $0x8] sm:$0xf]
    %v310 = vld [vmem:[#allocation10 + $0xc] sm:$0xf]
    %v311 = vld [vmem:[#allocation10 + $0x10] sm:$0xf]
    %v312 = vld [vmem:[#allocation10 + $0x14] sm:$0xf]
    %v313 = vld [vmem:[#allocation10 + $0x18] sm:$0xf]
    %v314 = vld [vmem:[#allocation10 + $0x1c] sm:$0xf]
    %v315 = vld [vmem:[#allocation10 + $0x20] sm:$0xf]
    %v316 = vld [vmem:[#allocation10 + $0x24] sm:$0xf]
    %v317 = vld [vmem:[#allocation10 + $0x28] sm:$0xf]
    %v318 = vld [vmem:[#allocation10 + $0x2c] sm:$0xf]
    %v319 = vld [vmem:[#allocation10 + $0x30] sm:$0xf]
    %v320 = vld [vmem:[#allocation10 + $0x34] sm:$0xf]
    %v321 = vld [vmem:[#allocation10 + $0x38] sm:$0xf]
    %v322 = vld [vmem:[#allocation10 + $0x3c] sm:$0xf]
    %v323 = vld [vmem:[%s8] sm:$0x1]
    %v324 = vld [vmem:[%s9] sm:$0x1]
    %v325 = vld [vmem:[%s10] sm:$0x1]
    %v327 = vlaneseq
    %v328 = vshrl.u32 %v327, 7
    %v329 = vsub.s32 0, %v328
    %v330 = vrot.slane %v306, %v329
    %v348 = vunpack.c.l.b16 %v290
    %v349 = vunpack.c.l.b16 %v291
    %v350 = vunpack.c.l.b16 %v292
    %v351 = vunpack.c.l.b16 %v293
    %v352 = vunpack.c.l.b16 %v294
    %v353 = vunpack.c.l.b16 %v295
    %v354 = vunpack.c.l.b16 %v296
    %v355 = vunpack.c.l.b16 %v297
    %v356 = vunpack.c.l.b16 %v298
    %v357 = vunpack.c.l.b16 %v299
    %v358 = vunpack.c.l.b16 %v300
    %v359 = vunpack.c.l.b16 %v301
    %v360 = vunpack.c.l.b16 %v302
    %v361 = vunpack.c.l.b16 %v303
    %v362 = vunpack.c.l.b16 %v304
    %v363 = vunpack.c.l.b16 %v305
    %v364 = vpack.c.b16 %v349, %v348
    %v365 = vpack.c.b16 %v351, %v350
    %v366 = vpack.c.b16 %v353, %v352
    %v367 = vpack.c.b16 %v355, %v354
    %v368 = vpack.c.b16 %v357, %v356
    %v369 = vpack.c.b16 %v359, %v358
    %v370 = vpack.c.b16 %v361, %v360
    %v371 = vpack.c.b16 %v363, %v362
    %380 = vmatprep.subr.bf16.mxu0 0
    %381 = vmatpush1.bf16.msra.mxu0 %v364
    %382 = vmatprep.subr.bf16.mxu0 0
    %383 = vmatpush1.bf16.msra.mxu0 %v365
    %384 = vmatprep.subr.bf16.mxu0 0
    %385 = vmatpush1.bf16.msra.mxu0 %v366
    %386 = vmatprep.subr.bf16.mxu0 0
    %387 = vmatpush1.bf16.msra.mxu0 %v367
    %388 = vmatprep.subr.bf16.mxu0 0
    %389 = vmatpush1.bf16.msra.mxu0 %v368
    %390 = vmatprep.subr.bf16.mxu0 0
    %391 = vmatpush1.bf16.msra.mxu0 %v369
    %392 = vmatprep.subr.bf16.mxu0 0
    %393 = vmatpush1.bf16.msra.mxu0 %v370
    %394 = vmatprep.subr.bf16.mxu0 0
    %395 = vmatpush1.bf16.msra.mxu0 %v371
    %396 = vmatprep.subr.bf16.mxu0 0
    %397 = vmatpush1.bf16.msra.mxu0 0
    %398 = vmatprep.subr.bf16.mxu0 0
    %399 = vmatpush1.bf16.msra.mxu0 0
    %400 = vmatprep.subr.bf16.mxu0 0
    %401 = vmatpush1.bf16.msra.mxu0 0
    %402 = vmatprep.subr.bf16.mxu0 0
    %403 = vmatpush1.bf16.msra.mxu0 0
    %404 = vmatprep.subr.bf16.mxu0 0
    %405 = vmatpush1.bf16.msra.mxu0 0
    %406 = vmatprep.subr.bf16.mxu0 0
    %407 = vmatpush1.bf16.msra.mxu0 0
    %408 = vmatprep.subr.bf16.mxu0 0
    %409 = vmatpush1.bf16.msra.mxu0 0
    %410 = vmatprep.subr.bf16.mxu0 0
    %411 = vmatpush1.bf16.msra.mxu0 0
    %412 = vmatprep.mubr.bf16.mxu0 0
    %413 = vmatmul.mubr.bf16.gmra.mrb[0].mxu0 %v289
    %v414 = vpop.f32.mrb[0].mxu0
    %v415 = vadd.f32 %v330, %v414
    %v416 = vpop.f32.mrb[0].mxu0
    %v417 = vpop.f32.mrb[0].mxu0
    %v418 = vpop.f32.mrb[0].mxu0
    %419 = vdwg.mxu0
    %v421 = vlaneseq
    %v422 = vshrl.u32 %v421, 7
    %v423 = vsub.s32 0, %v422
    %v424 = vrot.slane %v323, %v423
    %v442 = vunpack.c.l.b16 %v307
    %v443 = vunpack.c.l.b16 %v308
    %v444 = vunpack.c.l.b16 %v309
    %v445 = vunpack.c.l.b16 %v310
    %v446 = vunpack.c.l.b16 %v311
    %v447 = vunpack.c.l.b16 %v312
    %v448 = vunpack.c.l.b16 %v313
    %v449 = vunpack.c.l.b16 %v314
    %v450 = vunpack.c.l.b16 %v315
    %v451 = vunpack.c.l.b16 %v316
    %v452 = vunpack.c.l.b16 %v317
    %v453 = vunpack.c.l.b16 %v318
    %v454 = vunpack.c.l.b16 %v319
    %v455 = vunpack.c.l.b16 %v320
    %v456 = vunpack.c.l.b16 %v321
    %v457 = vunpack.c.l.b16 %v322
    %v458 = vpack.c.b16 %v443, %v442
    %v459 = vpack.c.b16 %v445, %v444
    %v460 = vpack.c.b16 %v447, %v446
    %v461 = vpack.c.b16 %v449, %v448
    %v462 = vpack.c.b16 %v451, %v450
    %v463 = vpack.c.b16 %v453, %v452
    %v464 = vpack.c.b16 %v455, %v454
    %v465 = vpack.c.b16 %v457, %v456
    %474 = vmatprep.subr.bf16.mxu0 0
    %475 = vmatpush1.bf16.msra.mxu0 %v458
    %476 = vmatprep.subr.bf16.mxu0 0
    %477 = vmatpush1.bf16.msra.mxu0 %v459
    %478 = vmatprep.subr.bf16.mxu0 0
    %479 = vmatpush1.bf16.msra.mxu0 %v460
    %480 = vmatprep.subr.bf16.mxu0 0
    %481 = vmatpush1.bf16.msra.mxu0 %v461
    %482 = vmatprep.subr.bf16.mxu0 0
    %483 = vmatpush1.bf16.msra.mxu0 %v462
    %484 = vmatprep.subr.bf16.mxu0 0
    %485 = vmatpush1.bf16.msra.mxu0 %v463
    %486 = vmatprep.subr.bf16.mxu0 0
    %487 = vmatpush1.bf16.msra.mxu0 %v464
    %488 = vmatprep.subr.bf16.mxu0 0
    %489 = vmatpush1.bf16.msra.mxu0 %v465
    %490 = vmatprep.subr.bf16.mxu0 0
    %491 = vmatpush1.bf16.msra.mxu0 0
    %492 = vmatprep.subr.bf16.mxu0 0
    %493 = vmatpush1.bf16.msra.mxu0 0
    %494 = vmatprep.subr.bf16.mxu0 0
    %495 = vmatpush1.bf16.msra.mxu0 0
    %496 = vmatprep.subr.bf16.mxu0 0
    %497 = vmatpush1.bf16.msra.mxu0 0
    %498 = vmatprep.subr.bf16.mxu0 0
    %499 = vmatpush1.bf16.msra.mxu0 0
    %500 = vmatprep.subr.bf16.mxu0 0
    %501 = vmatpush1.bf16.msra.mxu0 0
    %502 = vmatprep.subr.bf16.mxu0 0
    %503 = vmatpush1.bf16.msra.mxu0 0
    %504 = vmatprep.subr.bf16.mxu0 0
    %505 = vmatpush1.bf16.msra.mxu0 0
    %506 = vmatprep.mubr.bf16.mxu0 0
    %507 = vmatmul.mubr.bf16.gmra.mrb[0].mxu0 %v289
    %v508 = vpop.f32.mrb[0].mxu0
    %v509 = vadd.f32 %v424, %v508
    %v510 = vpop.f32.mrb[0].mxu0
    %v511 = vpop.f32.mrb[0].mxu0
    %v512 = vpop.f32.mrb[0].mxu0
    %513 = vdwg.mxu0
    %v514 = vtanh.pop %v509
    %v515 = vadd.f32 %v514, 1.0
    %v516 = vmul.f32 %v515, 0.5
    %v517 = vmul.f32 %v516, 12.0
    %v518 = vadd.f32 %v517, -10.0
    %v519 = vmul.f32 %v518, 1.442695
    %v520 = vpow.pop %v519
    %v521 = vtanh.pop %v415
    %v523 = vlaneseq
    %v524 = vshrl.u32 %v523, 7
    %v525 = vsub.s32 0, %v524
    %v526 = vrot.slane %v324, %v525
    %v528 = vmul.f32 %v521, %v526
    %v530 = vlaneseq
    %v531 = vshrl.u32 %v530, 7
    %v532 = vsub.s32 0, %v531
    %v533 = vrot.slane %v325, %v532
    %v535 = vadd.f32 %v528, %v533
    %536 = vst [vmem:[#allocation11] sm:$0xff] %v415
    %537 = vst [vmem:[#allocation11 + $0x8] sm:$0xff] %v520
    %538 = vst [vmem:[#allocation11 + $0x10] sm:$0xff] %v535
    // Predicated region
    $region66: #{tpu_custom_call.1} parent=1 // pred_check
      _
    $region67: #{tpu_custom_call.1} parent=1 // pred_check_branch
      %540 = sbr.rel (0) target = $region69
    $region68: #{tpu_custom_call.1} parent=1 // pred_region
      %s542 = ssub.s32 384, 384
      %543 = vsyncadd [#allocation4], %s542
      %s545 = sshll.u32 [#allocation11], 4
      %s546 = int_to_ptr.vmem [resolvable:$true] %s545
      %548 = dma.vmem_to_hbm [thread:$0]  %s546, 384, %s11, [#allocation4]
    $region69: #{tpu_custom_call.1} parent=1 // pred_fallthru
      _
    // Predicated region
    $region70: #{tpu_custom_call.1} parent=1 // pred_check
      _
    $region71: #{tpu_custom_call.1} parent=1 // pred_check_branch
      %550 = sbr.rel (0) target = $region73
    $region72: #{tpu_custom_call.1} parent=1 // pred_region
      %551 = dma.done [#allocation4], 384
    $region73: #{tpu_custom_call.1} parent=1 // pred_fallthru
      _
    %552 = vsyncpa [#allocation3], 1
    %553 = vsyncpa [#allocation6], 1
    %554 = vsyncpa [#allocation9], 1
    %555 = vsyncpa [#allocation4], 1

// kernel: tpu_custom_call.1
$region0: #{tpu_custom_call.1}
  #allocation0 [shape = 'u32[]', space=smem, size = 0x4, offset = 0x4, fixed_abs, tag = 'smem constant byte address 0x4 - core index']
  #allocation1 [shape = 'u32[144,128]{1,0:T(1,128)}', space=vmem, size = 0x12000, scoped, tag = 'internal scratch']
  %s0 = inlined_call_operand.hbm [shape: f32[8,32], index: 0, kind: input, shape index: {}]
  %s1 = inlined_call_operand.hbm [shape: bf16[32,128], index: 1, kind: input, shape index: {}]
  %s2 = inlined_call_operand.vmem [shape: f32[1,128], index: 2, kind: input, shape index: {}]
  %s3 = inlined_call_operand.hbm [shape: bf16[128,128], index: 3, kind: input, shape index: {}]
  %s4 = inlined_call_operand.vmem [shape: f32[1,128], index: 4, kind: input, shape index: {}]
  %s5 = inlined_call_operand.hbm [shape: bf16[128,128], index: 5, kind: input, shape index: {}]
  %s6 = inlined_call_operand.vmem [shape: f32[1,128], index: 6, kind: input, shape index: {}]
  %s7 = inlined_call_operand.hbm [shape: bf16[128,128], index: 7, kind: input, shape index: {}]
  %s8 = inlined_call_operand.vmem [shape: f32[1,128], index: 8, kind: input, shape index: {}]
  %s9 = inlined_call_operand.vmem [shape: f32[1,128], index: 9, kind: input, shape index: {}]
  %s10 = inlined_call_operand.vmem [shape: f32[1,128], index: 10, kind: input, shape index: {}]
  %s11 = inlined_call_operand.hbm [shape: f32[8,384], index: 11, kind: output, shape index: {}]
  %s12 = sld [smem:[#allocation0]]
  $region74: #{tpu_custom_call.1} parent=0
    _
  %s14 = ssub.s32 1, %s12
  %s15 = scalar_select 0, %s14, %s12
  $region1: #{tpu_custom_call.1} parent=0
    #allocation2 [shape = 'u8[4096]{0}', space=vmem, size = 0x1000, scoped, tag = 'input window, operand 0, single buffered']
    #allocation3 [shape = 's32[1]{0}', space=sflag, size = 0x4, scoped, tag = 'scoped memory for tpu_custom_call.1']
    #allocation4 [shape = 's32[1]{0}', space=sflag, size = 0x4, scoped, tag = 'scoped memory for tpu_custom_call.1']
    #allocation5 [shape = 'u8[8192]{0}', space=vmem, size = 0x2000, scoped, tag = 'input window, operand 1, single buffered']
    #allocation6 [shape = 's32[1]{0}', space=sflag, size = 0x4, scoped, tag = 'scoped memory for tpu_custom_call.1']
    #allocation7 [shape = 'u8[32768]{0}', space=vmem, size = 0x8000, scoped, tag = 'input window, operand 3, single buffered']
    #allocation8 [shape = 'u8[32768]{0}', space=vmem, size = 0x8000, scoped, tag = 'input window, operand 5, single buffered']
    #allocation9 [shape = 's32[1]{0}', space=sflag, size = 0x4, scoped, tag = 'scoped memory for tpu_custom_call.1']
    #allocation10 [shape = 'u8[32768]{0}', space=vmem, size = 0x8000, scoped, tag = 'input window, operand 7, single buffered']
    #allocation11 [shape = 'u8[12288]{0}', space=vmem, size = 0x3000, scoped, tag = 'output window, operand 0, single buffered']
    %16 = vsyncpa [#allocation3], 0
    %17 = vsyncpa [#allocation6], 0
    %18 = vsyncpa [#allocation9], 0
    %19 = vsyncpa [#allocation4], 0
    // Predicated region
    $region2: #{tpu_custom_call.1} parent=1 // pred_check
      _
    $region3: #{tpu_custom_call.1} parent=1 // pred_check_branch
      %21 = sbr.rel (0) target = $region5
    $region4: #{tpu_custom_call.1} parent=1 // pred_region
      %s23 = ssub.s32 128, 128
      %24 = vsyncadd [#allocation3], %s23
      %s26 = sshll.u32 [#allocation2], 4
      %s27 = int_to_ptr.vmem [resolvable:$true] %s26
      %29 = dma.hbm_to_vmem [thread:$0]  %s0, 128, %s27, [#allocation3]
    $region5: #{tpu_custom_call.1} parent=1 // pred_fallthru
      _
    // Predicated region
    $region6: #{tpu_custom_call.1} parent=1 // pred_check
      _
    $region7: #{tpu_custom_call.1} parent=1 // pred_check_branch
      %31 = sbr.rel (0) target = $region9
    $region8: #{tpu_custom_call.1} parent=1 // pred_region
      %s33 = ssub.s32 256, 256
      %34 = vsyncadd [#allocation6], %s33
      %s35 = sshll.u32 [#allocation5], 4
      %s36 = int_to_ptr.vmem [resolvable:$true] %s35
      %41 = dma.hbm_to_vmem [thread:$0]  %s1, 256, %s36, [#allocation6], 64, 64, 4
    $region9: #{tpu_custom_call.1} parent=1 // pred_fallthru
      _
    // Predicated region
    $region10: #{tpu_custom_call.1} parent=1 // pred_check
      _
    $region11: #{tpu_custom_call.1} parent=1 // pred_check_branch
      %43 = sbr.rel (0) target = $region13
    $region12: #{tpu_custom_call.1} parent=1 // pred_region
      _
    $region13: #{tpu_custom_call.1} parent=1 // pred_fallthru
      _
    // Predicated region
    $region14: #{tpu_custom_call.1} parent=1 // pred_check
      _
    $region15: #{tpu_custom_call.1} parent=1 // pred_check_branch
      %45 = sbr.rel (0) target = $region17
    $region16: #{tpu_custom_call.1} parent=1 // pred_region
      %s47 = ssub.s32 1024, 1024
      %48 = vsyncadd [#allocation6], %s47
      %s49 = sshll.u32 [#allocation7], 4
      %s50 = int_to_ptr.vmem [resolvable:$true] %s49
      %55 = dma.hbm_to_vmem [thread:$0]  %s3, 1024, %s50, [#allocation6], 64, 64, 4
    $region17: #{tpu_custom_call.1} parent=1 // pred_fallthru
      _
    // Predicated region
    $region18: #{tpu_custom_call.1} parent=1 // pred_check
      _
    $region19: #{tpu_custom_call.1} parent=1 // pred_check_branch
      %57 = sbr.rel (0) target = $region21
    $region20: #{tpu_custom_call.1} parent=1 // pred_region
      _
    $region21: #{tpu_custom_call.1} parent=1 // pred_fallthru
      _
    // Predicated region
    $region22: #{tpu_custom_call.1} parent=1 // pred_check
      _
    $region23: #{tpu_custom_call.1} parent=1 // pred_check_branch
      %59 = sbr.rel (0) target = $region25
    $region24: #{tpu_custom_call.1} parent=1 // pred_region
      %s61 = ssub.s32 1024, 1024
      %62 = vsyncadd [#allocation9], %s61
      %s63 = sshll.u32 [#allocation8], 4
      %s64 = int_to_ptr.vmem [resolvable:$true] %s63
      %69 = dma.hbm_to_vmem [thread:$0]  %s5, 1024, %s64, [#allocation9], 64, 64, 4
    $region25: #{tpu_custom_call.1} parent=1 // pred_fallthru
      _
    // Predicated region
    $region26: #{tpu_custom_call.1} parent=1 // pred_check
      _
    $region27: #{tpu_custom_call.1} parent=1 // pred_check_branch
      %71 = sbr.rel (0) target = $region29
    $region28: #{tpu_custom_call.1} parent=1 // pred_region
      _
    $region29: #{tpu_custom_call.1} parent=1 // pred_fallthru
      _
    // Predicated region
    $region30: #{tpu_custom_call.1} parent=1 // pred_check
      _
    $region31: #{tpu_custom_call.1} parent=1 // pred_check_branch
      %73 = sbr.rel (0) target = $region33
    $region32: #{tpu_custom_call.1} parent=1 // pred_region
      %s75 = ssub.s32 1024, 1024
      %76 = vsyncadd [#allocation9], %s75
      %s77 = sshll.u32 [#allocation10], 4
      %s78 = int_to_ptr.vmem [resolvable:$true] %s77
      %83 = dma.hbm_to_vmem [thread:$0]  %s7, 1024, %s78, [#allocation9], 64, 64, 4
    $region33: #{tpu_custom_call.1} parent=1 // pred_fallthru
      _
    // Predicated region
    $region34: #{tpu_custom_call.1} parent=1 // pred_check
      _
    $region35: #{tpu_custom_call.1} parent=1 // pred_check_branch
      %85 = sbr.rel (0) target = $region37
    $region36: #{tpu_custom_call.1} parent=1 // pred_region
      _
    $region37: #{tpu_custom_call.1} parent=1 // pred_fallthru
      _
    // Predicated region
    $region38: #{tpu_custom_call.1} parent=1 // pred_check
      _
    $region39: #{tpu_custom_call.1} parent=1 // pred_check_branch
      %87 = sbr.rel (0) target = $region41
    $region40: #{tpu_custom_call.1} parent=1 // pred_region
      _
    $region41: #{tpu_custom_call.1} parent=1 // pred_fallthru
      _
    // Predicated region
    $region42: #{tpu_custom_call.1} parent=1 // pred_check
      _
    $region43: #{tpu_custom_call.1} parent=1 // pred_check_branch
      %89 = sbr.rel (0) target = $region45
    $region44: #{tpu_custom_call.1} parent=1 // pred_region
      _
    $region45: #{tpu_custom_call.1} parent=1 // pred_fallthru
      _
    // Predicated region
    $region46: #{tpu_custom_call.1} parent=1 // pred_check
      _
    $region47: #{tpu_custom_call.1} parent=1 // pred_check_branch
      %91 = sbr.rel (0) target = $region49
    $region48: #{tpu_custom_call.1} parent=1 // pred_region
      %92 = dma.done [#allocation3], 128
    $region49: #{tpu_custom_call.1} parent=1 // pred_fallthru
      _
    // Predicated region
    $region50: #{tpu_custom_call.1} parent=1 // pred_check
      _
    $region51: #{tpu_custom_call.1} parent=1 // pred_check_branch
      %94 = sbr.rel (0) target = $region53
    $region52: #{tpu_custom_call.1} parent=1 // pred_region
      %95 = dma.done [#allocation6], 256
    $region53: #{tpu_custom_call.1} parent=1 // pred_fallthru
      _
    // Predicated region
    $region54: #{tpu_custom_call.1} parent=1 // pred_check
      _
    $region55: #{tpu_custom_call.1} parent=1 // pred_check_branch
      %97 = sbr.rel (0) target = $region57
    $region56: #{tpu_custom_call.1} parent=1 // pred_region
      %98 = dma.done [#allocation6], 1024
    $region57: #{tpu_custom_call.1} parent=1 // pred_fallthru
      _
    // Predicated region
    $region58: #{tpu_custom_call.1} parent=1 // pred_check
      _
    $region59: #{tpu_custom_call.1} parent=1 // pred_check_branch
      %100 = sbr.rel (0) target = $region61
    $region60: #{tpu_custom_call.1} parent=1 // pred_region
      %101 = dma.done [#allocation9], 1024
    $region61: #{tpu_custom_call.1} parent=1 // pred_fallthru
      _
    // Predicated region
    $region62: #{tpu_custom_call.1} parent=1 // pred_check
      _
    $region63: #{tpu_custom_call.1} parent=1 // pred_check_branch
      %103 = sbr.rel (0) target = $region65
    $region64: #{tpu_custom_call.1} parent=1 // pred_region
      %104 = dma.done [#allocation9], 1024
    $region65: #{tpu_custom_call.1} parent=1 // pred_fallthru
      _
    %v106 = vld [vmem:[#allocation2] sm:$0xff]
    %v107 = vpack.c.bf16 %v106, %v106
    %v108 = vld [vmem:[#allocation5] sm:$0xf]
    %v109 = vld [vmem:[#allocation5 + $0x4] sm:$0xf]
    %v110 = vld [vmem:[#allocation5 + $0x8] sm:$0xf]
    %v111 = vld [vmem:[#allocation5 + $0xc] sm:$0xf]
    %v112 = vld [vmem:[%s2] sm:$0x1]
    %v114 = vlaneseq
    %v115 = vshrl.u32 %v114, 7
    %v116 = vsub.s32 0, %v115
    %v117 = vrot.slane %v112, %v116
    %v123 = vunpack.c.l.b16 %v108
    %v124 = vunpack.c.l.b16 %v109
    %v125 = vunpack.c.l.b16 %v110
    %v126 = vunpack.c.l.b16 %v111
    %v127 = vpack.c.b16 %v124, %v123
    %v128 = vpack.c.b16 %v126, %v125
    %vm131 = vcmask 261120
    %v133 = vsel %vm131, %v107, 0
    %135 = vmatprep.subr.bf16.mxu0 0
    %136 = vmatpush1.bf16.msra.mxu0 %v127
    %137 = vmatprep.subr.bf16.mxu0 0
    %138 = vmatpush1.bf16.msra.mxu0 %v128
    %139 = vmatprep.subr.bf16.mxu0 0
    %140 = vmatpush1.bf16.msra.mxu0 0
    %141 = vmatprep.subr.bf16.mxu0 0
    %142 = vmatpush1.bf16.msra.mxu0 0
    %143 = vmatprep.subr.bf16.mxu0 0
    %144 = vmatpush1.bf16.msra.mxu0 0
    %145 = vmatprep.subr.bf16.mxu0 0
    %146 = vmatpush1.bf16.msra.mxu0 0
    %147 = vmatprep.subr.bf16.mxu0 0
    %148 = vmatpush1.bf16.msra.mxu0 0
    %149 = vmatprep.subr.bf16.mxu0 0
    %150 = vmatpush1.bf16.msra.mxu0 0
    %151 = vmatprep.subr.bf16.mxu0 0
    %152 = vmatpush1.bf16.msra.mxu0 0
    %153 = vmatprep.subr.bf16.mxu0 0
    %154 = vmatpush1.bf16.msra.mxu0 0
    %155 = vmatprep.subr.bf16.mxu0 0
    %156 = vmatpush1.bf16.msra.mxu0 0
    %157 = vmatprep.subr.bf16.mxu0 0
    %158 = vmatpush1.bf16.msra.mxu0 0
    %159 = vmatprep.subr.bf16.mxu0 0
    %160 = vmatpush1.bf16.msra.mxu0 0
    %161 = vmatprep.subr.bf16.mxu0 0
    %162 = vmatpush1.bf16.msra.mxu0 0
    %163 = vmatprep.subr.bf16.mxu0 0
    %164 = vmatpush1.bf16.msra.mxu0 0
    %165 = vmatprep.subr.bf16.mxu0 0
    %166 = vmatpush1.bf16.msra.mxu0 0
    %167 = vmatprep.mubr.bf16.mxu0 0
    %168 = vmatmul.mubr.bf16.gmra.mrb[0].mxu0 %v133
    %v169 = vpop.f32.mrb[0].mxu0
    %v170 = vadd.f32 %v117, %v169
    %v171 = vpop.f32.mrb[0].mxu0
    %v172 = vpop.f32.mrb[0].mxu0
    %v173 = vpop.f32.mrb[0].mxu0
    %174 = vdwg.mxu0
    %v175 = vmax.f32 %v170, 0.0
    %v176 = vpack.c.bf16 %v175, %v175
    %v177 = vld [vmem:[#allocation7] sm:$0xf]
    %v178 = vld [vmem:[#allocation7 + $0x4] sm:$0xf]
    %v179 = vld [vmem:[#allocation7 + $0x8] sm:$0xf]
    %v180 = vld [vmem:[#allocation7 + $0xc] sm:$0xf]
    %v181 = vld [vmem:[#allocation7 + $0x10] sm:$0xf]
    %v182 = vld [vmem:[#allocation7 + $0x14] sm:$0xf]
    %v183 = vld [vmem:[#allocation7 + $0x18] sm:$0xf]
    %v184 = vld [vmem:[#allocation7 + $0x1c] sm:$0xf]
    %v185 = vld [vmem:[#allocation7 + $0x20] sm:$0xf]
    %v186 = vld [vmem:[#allocation7 + $0x24] sm:$0xf]
    %v187 = vld [vmem:[#allocation7 + $0x28] sm:$0xf]
    %v188 = vld [vmem:[#allocation7 + $0x2c] sm:$0xf]
    %v189 = vld [vmem:[#allocation7 + $0x30] sm:$0xf]
    %v190 = vld [vmem:[#allocation7 + $0x34] sm:$0xf]
    %v191 = vld [vmem:[#allocation7 + $0x38] sm:$0xf]
    %v192 = vld [vmem:[#allocation7 + $0x3c] sm:$0xf]
    %v193 = vld [vmem:[%s4] sm:$0x1]
    %v195 = vlaneseq
    %v196 = vshrl.u32 %v195, 7
    %v197 = vsub.s32 0, %v196
    %v198 = vrot.slane %v193, %v197
    %v216 = vunpack.c.l.b16 %v177
    %v217 = vunpack.c.l.b16 %v178
    %v218 = vunpack.c.l.b16 %v179
    %v219 = vunpack.c.l.b16 %v180
    %v220 = vunpack.c.l.b16 %v181
    %v221 = vunpack.c.l.b16 %v182
    %v222 = vunpack.c.l.b16 %v183
    %v223 = vunpack.c.l.b16 %v184
    %v224 = vunpack.c.l.b16 %v185
    %v225 = vunpack.c.l.b16 %v186
    %v226 = vunpack.c.l.b16 %v187
    %v227 = vunpack.c.l.b16 %v188
    %v228 = vunpack.c.l.b16 %v189
    %v229 = vunpack.c.l.b16 %v190
    %v230 = vunpack.c.l.b16 %v191
    %v231 = vunpack.c.l.b16 %v192
    %v232 = vpack.c.b16 %v217, %v216
    %v233 = vpack.c.b16 %v219, %v218
    %v234 = vpack.c.b16 %v221, %v220
    %v235 = vpack.c.b16 %v223, %v222
    %v236 = vpack.c.b16 %v225, %v224
    %v237 = vpack.c.b16 %v227, %v226
    %v238 = vpack.c.b16 %v229, %v228
    %v239 = vpack.c.b16 %v231, %v230
    %248 = vmatprep.subr.bf16.mxu0 0
    %249 = vmatpush1.bf16.msra.mxu0 %v232
    %250 = vmatprep.subr.bf16.mxu0 0
    %251 = vmatpush1.bf16.msra.mxu0 %v233
    %252 = vmatprep.subr.bf16.mxu0 0
    %253 = vmatpush1.bf16.msra.mxu0 %v234
    %254 = vmatprep.subr.bf16.mxu0 0
    %255 = vmatpush1.bf16.msra.mxu0 %v235
    %256 = vmatprep.subr.bf16.mxu0 0
    %257 = vmatpush1.bf16.msra.mxu0 %v236
    %258 = vmatprep.subr.bf16.mxu0 0
    %259 = vmatpush1.bf16.msra.mxu0 %v237
    %260 = vmatprep.subr.bf16.mxu0 0
    %261 = vmatpush1.bf16.msra.mxu0 %v238
    %262 = vmatprep.subr.bf16.mxu0 0
    %263 = vmatpush1.bf16.msra.mxu0 %v239
    %264 = vmatprep.subr.bf16.mxu0 0
    %265 = vmatpush1.bf16.msra.mxu0 0
    %266 = vmatprep.subr.bf16.mxu0 0
    %267 = vmatpush1.bf16.msra.mxu0 0
    %268 = vmatprep.subr.bf16.mxu0 0
    %269 = vmatpush1.bf16.msra.mxu0 0
    %270 = vmatprep.subr.bf16.mxu0 0
    %271 = vmatpush1.bf16.msra.mxu0 0
    %272 = vmatprep.subr.bf16.mxu0 0
    %273 = vmatpush1.bf16.msra.mxu0 0
    %274 = vmatprep.subr.bf16.mxu0 0
    %275 = vmatpush1.bf16.msra.mxu0 0
    %276 = vmatprep.subr.bf16.mxu0 0
    %277 = vmatpush1.bf16.msra.mxu0 0
    %278 = vmatprep.subr.bf16.mxu0 0
    %279 = vmatpush1.bf16.msra.mxu0 0
    %280 = vmatprep.mubr.bf16.mxu0 0
    %281 = vmatmul.mubr.bf16.gmra.mrb[0].mxu0 %v176
    %v282 = vpop.f32.mrb[0].mxu0
    %v283 = vadd.f32 %v198, %v282
    %v284 = vpop.f32.mrb[0].mxu0
    %v285 = vpop.f32.mrb[0].mxu0
    %v286 = vpop.f32.mrb[0].mxu0
    %287 = vdwg.mxu0
    %v288 = vmax.f32 %v283, 0.0
    %v289 = vpack.c.bf16 %v288, %v288
    %v290 = vld [vmem:[#allocation8] sm:$0xf]
    %v291 = vld [vmem:[#allocation8 + $0x4] sm:$0xf]
    %v292 = vld [vmem:[#allocation8 + $0x8] sm:$0xf]
    %v293 = vld [vmem:[#allocation8 + $0xc] sm:$0xf]
    %v294 = vld [vmem:[#allocation8 + $0x10] sm:$0xf]
    %v295 = vld [vmem:[#allocation8 + $0x14] sm:$0xf]
    %v296 = vld [vmem:[#allocation8 + $0x18] sm:$0xf]
    %v297 = vld [vmem:[#allocation8 + $0x1c] sm:$0xf]
    %v298 = vld [vmem:[#allocation8 + $0x20] sm:$0xf]
    %v299 = vld [vmem:[#allocation8 + $0x24] sm:$0xf]
    %v300 = vld [vmem:[#allocation8 + $0x28] sm:$0xf]
    %v301 = vld [vmem:[#allocation8 + $0x2c] sm:$0xf]
    %v302 = vld [vmem:[#allocation8 + $0x30] sm:$0xf]
    %v303 = vld [vmem:[#allocation8 + $0x34] sm:$0xf]
    %v304 = vld [vmem:[#allocation8 + $0x38] sm:$0xf]
    %v305 = vld [vmem:[#allocation8 + $0x3c] sm:$0xf]
    %v306 = vld [vmem:[%s6] sm:$0x1]
    %v307 = vld [vmem:[#allocation10] sm:$0xf]
    %v308 = vld [vmem:[#allocation10 + $0x4] sm:$0xf]
    %v309 = vld [vmem:[#allocation10 + $0x8] sm:$0xf]
    %v310 = vld [vmem:[#allocation10 + $0xc] sm:$0xf]
    %v311 = vld [vmem:[#allocation10 + $0x10] sm:$0xf]
    %v312 = vld [vmem:[#allocation10 + $0x14] sm:$0xf]
    %v313 = vld [vmem:[#allocation10 + $0x18] sm:$0xf]
    %v314 = vld [vmem:[#allocation10 + $0x1c] sm:$0xf]
    %v315 = vld [vmem:[#allocation10 + $0x20] sm:$0xf]
    %v316 = vld [vmem:[#allocation10 + $0x24] sm:$0xf]
    %v317 = vld [vmem:[#allocation10 + $0x28] sm:$0xf]
    %v318 = vld [vmem:[#allocation10 + $0x2c] sm:$0xf]
    %v319 = vld [vmem:[#allocation10 + $0x30] sm:$0xf]
    %v320 = vld [vmem:[#allocation10 + $0x34] sm:$0xf]
    %v321 = vld [vmem:[#allocation10 + $0x38] sm:$0xf]
    %v322 = vld [vmem:[#allocation10 + $0x3c] sm:$0xf]
    %v323 = vld [vmem:[%s8] sm:$0x1]
    %v324 = vld [vmem:[%s9] sm:$0x1]
    %v325 = vld [vmem:[%s10] sm:$0x1]
    %v327 = vlaneseq
    %v328 = vshrl.u32 %v327, 7
    %v329 = vsub.s32 0, %v328
    %v330 = vrot.slane %v306, %v329
    %v348 = vunpack.c.l.b16 %v290
    %v349 = vunpack.c.l.b16 %v291
    %v350 = vunpack.c.l.b16 %v292
    %v351 = vunpack.c.l.b16 %v293
    %v352 = vunpack.c.l.b16 %v294
    %v353 = vunpack.c.l.b16 %v295
    %v354 = vunpack.c.l.b16 %v296
    %v355 = vunpack.c.l.b16 %v297
    %v356 = vunpack.c.l.b16 %v298
    %v357 = vunpack.c.l.b16 %v299
    %v358 = vunpack.c.l.b16 %v300
    %v359 = vunpack.c.l.b16 %v301
    %v360 = vunpack.c.l.b16 %v302
    %v361 = vunpack.c.l.b16 %v303
    %v362 = vunpack.c.l.b16 %v304
    %v363 = vunpack.c.l.b16 %v305
    %v364 = vpack.c.b16 %v349, %v348
    %v365 = vpack.c.b16 %v351, %v350
    %v366 = vpack.c.b16 %v353, %v352
    %v367 = vpack.c.b16 %v355, %v354
    %v368 = vpack.c.b16 %v357, %v356
    %v369 = vpack.c.b16 %v359, %v358
    %v370 = vpack.c.b16 %v361, %v360
    %v371 = vpack.c.b16 %v363, %v362
    %380 = vmatprep.subr.bf16.mxu0 0
    %381 = vmatpush1.bf16.msra.mxu0 %v364
    %382 = vmatprep.subr.bf16.mxu0 0
    %383 = vmatpush1.bf16.msra.mxu0 %v365
    %384 = vmatprep.subr.bf16.mxu0 0
    %385 = vmatpush1.bf16.msra.mxu0 %v366
    %386 = vmatprep.subr.bf16.mxu0 0
    %387 = vmatpush1.bf16.msra.mxu0 %v367
    %388 = vmatprep.subr.bf16.mxu0 0
    %389 = vmatpush1.bf16.msra.mxu0 %v368
    %390 = vmatprep.subr.bf16.mxu0 0
    %391 = vmatpush1.bf16.msra.mxu0 %v369
    %392 = vmatprep.subr.bf16.mxu0 0
    %393 = vmatpush1.bf16.msra.mxu0 %v370
    %394 = vmatprep.subr.bf16.mxu0 0
    %395 = vmatpush1.bf16.msra.mxu0 %v371
    %396 = vmatprep.subr.bf16.mxu0 0
    %397 = vmatpush1.bf16.msra.mxu0 0
    %398 = vmatprep.subr.bf16.mxu0 0
    %399 = vmatpush1.bf16.msra.mxu0 0
    %400 = vmatprep.subr.bf16.mxu0 0
    %401 = vmatpush1.bf16.msra.mxu0 0
    %402 = vmatprep.subr.bf16.mxu0 0
    %403 = vmatpush1.bf16.msra.mxu0 0
    %404 = vmatprep.subr.bf16.mxu0 0
    %405 = vmatpush1.bf16.msra.mxu0 0
    %406 = vmatprep.subr.bf16.mxu0 0
    %407 = vmatpush1.bf16.msra.mxu0 0
    %408 = vmatprep.subr.bf16.mxu0 0
    %409 = vmatpush1.bf16.msra.mxu0 0
    %410 = vmatprep.subr.bf16.mxu0 0
    %411 = vmatpush1.bf16.msra.mxu0 0
    %412 = vmatprep.mubr.bf16.mxu0 0
    %413 = vmatmul.mubr.bf16.gmra.mrb[0].mxu0 %v289
    %v414 = vpop.f32.mrb[0].mxu0
    %v415 = vadd.f32 %v330, %v414
    %v416 = vpop.f32.mrb[0].mxu0
    %v417 = vpop.f32.mrb[0].mxu0
    %v418 = vpop.f32.mrb[0].mxu0
    %419 = vdwg.mxu0
    %v421 = vlaneseq
    %v422 = vshrl.u32 %v421, 7
    %v423 = vsub.s32 0, %v422
    %v424 = vrot.slane %v323, %v423
    %v442 = vunpack.c.l.b16 %v307
    %v443 = vunpack.c.l.b16 %v308
    %v444 = vunpack.c.l.b16 %v309
    %v445 = vunpack.c.l.b16 %v310
    %v446 = vunpack.c.l.b16 %v311
    %v447 = vunpack.c.l.b16 %v312
    %v448 = vunpack.c.l.b16 %v313
    %v449 = vunpack.c.l.b16 %v314
    %v450 = vunpack.c.l.b16 %v315
    %v451 = vunpack.c.l.b16 %v316
    %v452 = vunpack.c.l.b16 %v317
    %v453 = vunpack.c.l.b16 %v318
    %v454 = vunpack.c.l.b16 %v319
    %v455 = vunpack.c.l.b16 %v320
    %v456 = vunpack.c.l.b16 %v321
    %v457 = vunpack.c.l.b16 %v322
    %v458 = vpack.c.b16 %v443, %v442
    %v459 = vpack.c.b16 %v445, %v444
    %v460 = vpack.c.b16 %v447, %v446
    %v461 = vpack.c.b16 %v449, %v448
    %v462 = vpack.c.b16 %v451, %v450
    %v463 = vpack.c.b16 %v453, %v452
    %v464 = vpack.c.b16 %v455, %v454
    %v465 = vpack.c.b16 %v457, %v456
    %474 = vmatprep.subr.bf16.mxu0 0
    %475 = vmatpush1.bf16.msra.mxu0 %v458
    %476 = vmatprep.subr.bf16.mxu0 0
    %477 = vmatpush1.bf16.msra.mxu0 %v459
    %478 = vmatprep.subr.bf16.mxu0 0
    %479 = vmatpush1.bf16.msra.mxu0 %v460
    %480 = vmatprep.subr.bf16.mxu0 0
    %481 = vmatpush1.bf16.msra.mxu0 %v461
    %482 = vmatprep.subr.bf16.mxu0 0
    %483 = vmatpush1.bf16.msra.mxu0 %v462
    %484 = vmatprep.subr.bf16.mxu0 0
    %485 = vmatpush1.bf16.msra.mxu0 %v463
    %486 = vmatprep.subr.bf16.mxu0 0
    %487 = vmatpush1.bf16.msra.mxu0 %v464
    %488 = vmatprep.subr.bf16.mxu0 0
    %489 = vmatpush1.bf16.msra.mxu0 %v465
    %490 = vmatprep.subr.bf16.mxu0 0
    %491 = vmatpush1.bf16.msra.mxu0 0
    %492 = vmatprep.subr.bf16.mxu0 0
    %493 = vmatpush1.bf16.msra.mxu0 0
    %494 = vmatprep.subr.bf16.mxu0 0
    %495 = vmatpush1.bf16.msra.mxu0 0
    %496 = vmatprep.subr.bf16.mxu0 0
    %497 = vmatpush1.bf16.msra.mxu0 0
    %498 = vmatprep.subr.bf16.mxu0 0
    %499 = vmatpush1.bf16.msra.mxu0 0
    %500 = vmatprep.subr.bf16.mxu0 0
    %501 = vmatpush1.bf16.msra.mxu0 0
    %502 = vmatprep.subr.bf16.mxu0 0
    %503 = vmatpush1.bf16.msra.mxu0 0
    %504 = vmatprep.subr.bf16.mxu0 0
    %505 = vmatpush1.bf16.msra.mxu0 0
    %506 = vmatprep.mubr.bf16.mxu0 0
    %507 = vmatmul.mubr.bf16.gmra.mrb[0].mxu0 %v289
    %v508 = vpop.f32.mrb[0].mxu0
    %v509 = vadd.f32 %v424, %v508
    %v510 = vpop.f32.mrb[0].mxu0
    %v511 = vpop.f32.mrb[0].mxu0
    %v512 = vpop.f32.mrb[0].mxu0
    %513 = vdwg.mxu0
    %v514 = vtanh.pop %v509
    %v515 = vadd.f32 %v514, 1.0
    %v516 = vmul.f32 %v515, 0.5
    %v517 = vmul.f32 %v516, 12.0
    %v518 = vadd.f32 %v517, -10.0
    %v519 = vmul.f32 %v518, 1.442695
    %v520 = vpow.pop %v519
    %v521 = vtanh.pop %v415
    %v523 = vlaneseq
    %v524 = vshrl.u32 %v523, 7
    %v525 = vsub.s32 0, %v524
    %v526 = vrot.slane %v324, %v525
    %v528 = vmul.f32 %v521, %v526
    %v530 = vlaneseq
    %v531 = vshrl.u32 %v530, 7
    %v532 = vsub.s32 0, %v531
    %v533 = vrot.slane %v325, %v532
    %v535 = vadd.f32 %v528, %v533
    %536 = vst [vmem:[#allocation11] sm:$0xff] %v415
    %537 = vst [vmem:[#allocation11 + $0x8] sm:$0xff] %v520
    %538 = vst [vmem:[#allocation11 + $0x10] sm:$0xff] %v535
    // Predicated region
    $region66: #{tpu_custom_call.1} parent=1 // pred_check
      _
    $region67: #{tpu_custom_call.1} parent=1 // pred_check_branch
      %540 = sbr.rel (0) target = $region69
    $region68: #{tpu_custom_call.1} parent=1 // pred_region
      %s542 = ssub.s32 384, 384
      %543 = vsyncadd [#allocation4], %s542
      %s545 = sshll.u32 [#allocation11], 4
      %s546 = int_to_ptr.vmem [resolvable:$true] %s545
      %548 = dma.vmem_to_hbm [thread:$0]  %s546, 384, %s11, [#allocation4]
    $region69: #{tpu_custom_call.1} parent=1 // pred_fallthru
      _
    // Predicated region
    $region70: #{tpu_custom_call.1} parent=1 // pred_check
      _
    $region71: #{tpu_custom_call.1} parent=1 // pred_check_branch
      %550 = sbr.rel (0) target = $region73
    $region72: #{tpu_custom_call.1} parent=1 // pred_region
      %551 = dma.done [#allocation4], 384
    $region73: #{tpu_custom_call.1} parent=1 // pred_fallthru
      _
    %552 = vsyncpa [#allocation3], 1
    %553 = vsyncpa [#allocation6], 1
    %554 = vsyncpa [#allocation9], 1
    %555 = vsyncpa [#allocation4], 1

</llo_original>
